<compile_context>
chip_gen: v6e
topology: v6e:2x2x1
jax: 0.10.0
libtpu: 0.0.40
codegen_flags: <defaults>
</compile_context>

<pallas_src>
import functools

import jax
import jax.numpy as jnp
from jax import lax
from jax.experimental import pallas as pl
from jax.experimental.pallas import tpu as pltpu

NEG_SLOPE = 0.2
BN_EPS = 1e-5


# ---------------------------------------------------------------------------
# Small helpers
# ---------------------------------------------------------------------------

def _round_up(x, m):
    return (x + m - 1) // m * m


def _padded_bytes(minor2, itemsize):
    """Bytes of a (sublane, lane) slab after TPU tile padding."""
    sub, lane = minor2
    sub_tile = 8 * max(1, 4 // itemsize)              # 8 rows (f32) / 16 (bf16)
    return _round_up(max(sub, 1), sub_tile) * _round_up(max(lane, 1), 128) * itemsize


def _vmem_limit_bytes():
    """Generation-aware VMEM limit: physical capacity minus headroom."""
    cap = None
    try:
        cap = getattr(pltpu.get_tpu_info(), "vmem_capacity_bytes", None)
    except Exception:
        cap = None
    if not cap:
        cap = 64 * 1024 * 1024                        # conservative (v7x per-core)
    return int(max(32 * 1024 * 1024, min(cap - 16 * 1024 * 1024, 96 * 1024 * 1024)))


def _choose_samples_per_block(n, rows_per_sample, per_sample_bytes, budget_bytes,
                              min_rows=256):
    """Samples per grid step: divides N, keeps 8-row block alignment, fits the
    VMEM budget, prefers >=2 grid steps (megacore) and >=min_rows rows/step."""
    cands = [d for d in range(1, n + 1)
             if n % d == 0 and ((d * rows_per_sample) % 8 == 0 or d == n)]
    fits = [d for d in cands if d * per_sample_bytes <= budget_bytes] or cands[:1]
    multi = [d for d in fits if n // d >= 2] or fits
    big = [d for d in multi if d * rows_per_sample >= min_rows]
    return min(big) if big else max(multi)


# ---------------------------------------------------------------------------
# Kernels
# ---------------------------------------------------------------------------

def _conv_lrelu_rows(x_ref, w_ref, b_ref, *, hout, wout):
    """Conv (9 statically-unrolled shifted MXU matmuls, f32 acc) + bias + LeakyReLU.

    x_ref: (TN, 4, Hout+1, Wout+1, Cin) bf16 phase block, phase = 2*(kh%2)+(kw%2)
    w_ref: (3, 3, Cin, Cout) bf16 tap weights ; b_ref: (1, Cout) f32
    Returns f32 (TN*Hout*Wout, Cout) activation rows (flat NHWC order).
    """
    tn = x_ref.shape[0]
    cin = x_ref.shape[-1]
    cout = w_ref.shape[-1]
    rows = tn * hout * wout
    acc = jnp.zeros((rows, cout), jnp.float32)
    for kh in range(3):
        for kw in range(3):
            ph = 2 * (kh % 2) + (kw % 2)
            dh, dw = kh // 2, kw // 2
            slab = x_ref[:, ph, dh:dh + hout, dw:dw + wout, :]   # (TN,Ho,Wo,Cin)
            acc = acc + jnp.dot(slab.reshape(rows, cin), w_ref[kh, kw],
                                preferred_element_type=jnp.float32)
    conv = acc + b_ref[...]
    return jnp.where(conv >= 0.0, conv, NEG_SLOPE * conv)


def _stats8(act, cout):
    """(8, Cout) slab: row0 = sum, row1 = sum of squares, rest zero."""
    s1 = jnp.sum(act, axis=0, keepdims=True)
    s2 = jnp.sum(act * act, axis=0, keepdims=True)
    return jnp.concatenate([s1, s2, jnp.zeros((6, cout), jnp.float32)], axis=0)


def _conv_stats_kernel(x_ref, w_ref, b_ref, stats_ref, *, hout, wout):
    """BN phase 1 (recompute variant): stats only, no activation intermediate."""
    act = _conv_lrelu_rows(x_ref, w_ref, b_ref, hout=hout, wout=wout)
    stats_ref[...] = _stats8(act, act.shape[-1])[None]


def _conv_affine_kernel(x_ref, w_ref, b_ref, scale_ref, shift_ref, o_ref, *,
                        hout, wout):
    """Fused conv + bias + LeakyReLU + per-channel scale/shift -> f32 rows.
    Used for BN phase 2 (recompute variant) and the no-BN path (scale=1, shift=0)."""
    act = _conv_lrelu_rows(x_ref, w_ref, b_ref, hout=hout, wout=wout)
    o_ref[...] = act * scale_ref[...] + shift_ref[...]


def _conv_act_stats_kernel(x_ref, w_ref, b_ref, act_ref, stats_ref, *, hout, wout):
    """BN phase 1 (store variant): activation intermediate (bf16) + stats slab."""
    act = _conv_lrelu_rows(x_ref, w_ref, b_ref, hout=hout, wout=wout)
    act_st = act.astype(act_ref.dtype)
    act_ref[...] = act_st
    # Stats from the stored (rounded) values so phase 2 normalizes consistently.
    act_r = act_st.astype(jnp.float32)
    stats_ref[...] = _stats8(act_r, act_r.shape[-1])[None]


def _affine_kernel(act_ref, scale_ref, shift_ref, o_ref):
    """BN phase 2 (store variant): out = act * scale + shift (pure VPU)."""
    o_ref[...] = act_ref[...].astype(jnp.float32) * scale_ref[...] + shift_ref[...]


# ---------------------------------------------------------------------------
# Wrapper
# ---------------------------------------------------------------------------

def _phase_input(x, hout, wout, mxu_dtype):
    """(N, Cin, H, W) -> (N, 4, Hout+1, Wout+1, Cin) phase array (bf16).

    Phase p = 2*rh + rw holds the conv-padded pixels with row parity rh and
    column parity rw, so tap (kh, kw) reads phase (kh%2, kw%2) at static
    offsets (kh//2, kw//2).  Single cheap XLA pad/transpose pass (~1x input
    bytes) instead of a 9x im2col blow-up.
    """
    n, cin, h, w = x.shape
    hp, wp = hout + 1, wout + 1
    xp = jnp.pad(x, ((0, 0), (0, 0), (1, 2 * hp - h - 1), (1, 2 * wp - w - 1)))
    xr = xp.reshape(n, cin, hp, 2, wp, 2)
    xph = jnp.transpose(xr, (0, 3, 5, 2, 4, 1)).reshape(n, 4, hp, wp, cin)
    return xph.astype(mxu_dtype)


def downsample_forward(x, weight, bias, gamma, beta, is_bn=True,
                       mxu_dtype=jnp.bfloat16, act_dtype=jnp.bfloat16):
    """x: (N, Cin, H, W); weight: (Cout, Cin, 3, 3) -> (N, Cout, Hout, Wout)."""
    n, cin, h, w = x.shape
    cout = weight.shape[0]
    hout = (h - 1) // 2 + 1
    wout = (w - 1) // 2 + 1
    hp, wp = hout + 1, wout + 1
    s = hout * wout
    m = n * s

    xph = _phase_input(x, hout, wout, mxu_dtype)                  # (N,4,HP,WP,Cin)
    w_taps = jnp.transpose(weight, (2, 3, 1, 0)).astype(mxu_dtype)  # (3,3,Cin,Cout)
    b2d = bias.astype(jnp.float32).reshape(1, cout)

    vmem_limit = _vmem_limit_bytes()
    budget = int(vmem_limit * 0.6)

    # Per-sample VMEM with tile padding: double-buffered bf16 phase block,
    # double-buffered f32 output rows, ~4 f32 row temporaries (acc/epilogue).
    in_blk = 4 * hp * _padded_bytes((wp, cin), 2)
    row_f32 = _padded_bytes((s, cout), 4)
    per_sample = 2 * in_blk + 2 * row_f32 + 4 * row_f32
    fixed = 2 * 9 * _padded_bytes((cin, cout), 2) + 8 * _padded_bytes((1, cout), 4)
    tn = _choose_samples_per_block(n, s, per_sample, max(budget - fixed, per_sample))
    nb = n // tn
    rows = tn * s

    x_spec = pl.BlockSpec((tn, 4, hp, wp, cin), lambda i: (i, 0, 0, 0, 0))
    w_spec = pl.BlockSpec((3, 3, cin, cout), lambda i: (0, 0, 0, 0))   # VMEM-resident
    vec_spec = pl.BlockSpec((1, cout), lambda i: (0, 0))               # VMEM-resident
    row_spec = pl.BlockSpec((rows, cout), lambda i: (i, 0))
    stats_spec = pl.BlockSpec((1, 8, cout), lambda i: (i, 0, 0))

    cparams = pltpu.CompilerParams(
        dimension_semantics=("parallel",),     # fully parallel -> v7x 2-TC split
        vmem_limit_bytes=vmem_limit,
    )
    conv_cost = pl.CostEstimate(
        flops=2 * m * 9 * cin * cout,
        transcendentals=0,
        bytes_accessed=n * 4 * hp * wp * cin * 2 + 9 * cin * cout * 2 + m * cout * 4,
    )

    if not is_bn:
        ones = jnp.ones((1, cout), jnp.float32)
        zeros = jnp.zeros((1, cout), jnp.float32)
        out2d = pl.pallas_call(
            functools.partial(_conv_affine_kernel, hout=hout, wout=wout),
            out_shape=jax.ShapeDtypeStruct((m, cout), jnp.float32),
            grid=(nb,),
            in_specs=[x_spec, w_spec, vec_spec, vec_spec, vec_spec],
            out_specs=row_spec,
            compiler_params=cparams,
            cost_estimate=conv_cost,
        )(xph, w_taps, b2d, ones, zeros)
    else:
        recompute = (2 * cin <= cout)   # cheap-input regime: no act intermediate
        if recompute:
            stats = pl.pallas_call(
                functools.partial(_conv_stats_kernel, hout=hout, wout=wout),
                out_shape=jax.ShapeDtypeStruct((nb, 8, cout), jnp.float32),
                grid=(nb,),
                in_specs=[x_spec, w_spec, vec_spec],
                out_specs=stats_spec,
                compiler_params=cparams,
                cost_estimate=conv_cost,
            )(xph, w_taps, b2d)
        else:
            act2d, stats = pl.pallas_call(
                functools.partial(_conv_act_stats_kernel, hout=hout, wout=wout),
                out_shape=(jax.ShapeDtypeStruct((m, cout), act_dtype),
                           jax.ShapeDtypeStruct((nb, 8, cout), jnp.float32)),
                grid=(nb,),
                in_specs=[x_spec, w_spec, vec_spec],
                out_specs=(row_spec, stats_spec),
                compiler_params=cparams,
                cost_estimate=conv_cost,
            )(xph, w_taps, b2d)

        # Fold BN statistics into one per-channel (scale, shift) pair (tiny math).
        stats_sum = jnp.sum(stats, axis=0)                      # (8, Cout)
        count = jnp.float32(m)
        mean = stats_sum[0] / count
        # TODO(synk): E[x^2]-mean^2 in f32 with a clamp; use Welford/two-pass if
        # tighter accumulation accuracy is ever needed.
        var = jnp.maximum(stats_sum[1] / count - mean * mean, 0.0)
        inv = lax.rsqrt(var + BN_EPS)
        g32 = gamma.astype(jnp.float32)
        scale = (g32 * inv).reshape(1, cout)
        shift = (beta.astype(jnp.float32) - mean * g32 * inv).reshape(1, cout)

        if recompute:
            out2d = pl.pallas_call(
                functools.partial(_conv_affine_kernel, hout=hout, wout=wout),
                out_shape=jax.ShapeDtypeStruct((m, cout), jnp.float32),
                grid=(nb,),
                in_specs=[x_spec, w_spec, vec_spec, vec_spec, vec_spec],
                out_specs=row_spec,
                compiler_params=cparams,
                cost_estimate=conv_cost,
            )(xph, w_taps, b2d, scale, shift)
        else:
            per_sample2 = (2 * _padded_bytes((s, cout), 2)
                           + 3 * _padded_bytes((s, cout), 4))
            tn2 = _choose_samples_per_block(n, s, per_sample2, budget, min_rows=1024)
            rows2 = tn2 * s
            act_spec = pl.BlockSpec((rows2, cout), lambda i: (i, 0))
            out2d = pl.pallas_call(
                _affine_kernel,
                out_shape=jax.ShapeDtypeStruct((m, cout), jnp.float32),
                grid=(n // tn2,),
                in_specs=[act_spec, vec_spec, vec_spec],
                out_specs=act_spec,
                compiler_params=cparams,
                cost_estimate=pl.CostEstimate(
                    flops=2 * m * cout, transcendentals=0,
                    bytes_accessed=m * cout * 2 + m * cout * 4),
            )(act2d, scale, shift)

    # flat-NHWC (M, Cout) -> (N, Cout, Hout, Wout).
    # TODO(synk): fold this transpose into the kernel store (NCHW-direct output).
    return out2d.reshape(n, hout, wout, cout).transpose(0, 3, 1, 2)


# ---------------------------------------------------------------------------
# Reference (pure JAX; bf16 conv operands to match the kernel's MXU precision)
# ---------------------------------------------------------------------------

def _reference(x, weight, bias, gamma, beta, is_bn, mxu_dtype=jnp.bfloat16,
               act_round_dtype=None):
    conv = lax.conv_general_dilated(
        x.astype(mxu_dtype), weight.astype(mxu_dtype),
        window_strides=(2, 2), padding=((1, 1), (1, 1)),
        dimension_numbers=("NCHW", "OIHW", "NCHW"),
        preferred_element_type=jnp.float32)
    conv = conv + bias.reshape(1, -1, 1, 1).astype(jnp.float32)
    act = jnp.where(conv >= 0.0, conv, NEG_SLOPE * conv)
    if is_bn:
        if act_round_dtype is not None:        # model the bf16 act intermediate
            act = act.astype(act_round_dtype).astype(jnp.float32)
        mean = jnp.mean(act, axis=(0, 2, 3), keepdims=True)
        var = jnp.mean((act - mean) ** 2, axis=(0, 2, 3), keepdims=True)
        act = ((act - mean) * lax.rsqrt(var + BN_EPS)
               * gamma.reshape(1, -1, 1, 1) + beta.reshape(1, -1, 1, 1))
    return act


# ---------------------------------------------------------------------------
# Self-test
# ---------------------------------------------------------------------------

def _run_case(n, cin, cout, h, w, key):
    k_x, k_w, k_b, k_g, k_be = jax.random.split(key, 5)
    x = jax.random.normal(k_x, (n, cin, h, w), dtype=jnp.float32)
    fan_in = cin * 9
    bound = 1.0 / (fan_in ** 0.5)
    weight = jax.random.uniform(k_w, (cout, cin, 3, 3), jnp.float32, -bound, bound)
    bias = jax.random.uniform(k_b, (cout,), jnp.float32, -bound, bound)
    gamma = jax.random.uniform(k_g, (cout,), jnp.float32, 0.5, 1.5)
    beta = jax.random.uniform(k_be, (cout,), jnp.float32, -0.2, 0.2)
    hout, wout = (h - 1) // 2 + 1, (w - 1) // 2 + 1

    fwd = jax.jit(downsample_forward, static_argnames=("is_bn", "act_dtype"))

    out_nobn = fwd(x, weight, bias, gamma, beta, is_bn=False)
    # Strict logic check: f32 intermediate (the recompute path ignores act_dtype).
    out_bn = fwd(x, weight, bias, gamma, beta, is_bn=True, act_dtype=jnp.float32)
    jax.block_until_ready((out_nobn, out_bn))
    assert out_nobn.shape == (n, cout, hout, wout), out_nobn.shape
    assert out_bn.shape == (n, cout, hout, wout), out_bn.shape

    ref_nobn = _reference(x, weight, bias, gamma, beta, is_bn=False)
    ref_bn = _reference(x, weight, bias, gamma, beta, is_bn=True)
    err_nobn = float(jnp.max(jnp.abs(out_nobn - ref_nobn)))
    err_bn = float(jnp.max(jnp.abs(out_bn - ref_bn)))
    assert err_nobn < 5e-3, f"no-BN mismatch: {err_nobn}"
    assert err_bn < 5e-3, f"BN mismatch: {err_bn}"

    if 2 * cin > cout:
        # Also exercise the production default of the store variant (bf16 act).
        out_bn_bf = fwd(x, weight, bias, gamma, beta, is_bn=True,
                        act_dtype=jnp.bfloat16)
        jax.block_until_ready(out_bn_bf)
        ref_bn_bf = _reference(x, weight, bias, gamma, beta, is_bn=True,
                               act_round_dtype=jnp.bfloat16)
        # bf16 storage rounding (<= 1 ulp of the activation) gets amplified by
        # the BN normalization (gamma/std); bound the admissible deviation.
        var_c = jnp.var(ref_nobn, axis=(0, 2, 3))
        amp = jnp.max(jnp.abs(ref_nobn)) * jnp.max(gamma * lax.rsqrt(var_c + BN_EPS))
        tol = float(5e-3 + 2.0 ** -6 * amp)
        err = float(jnp.max(jnp.abs(out_bn_bf - ref_bn_bf)))
        assert err < tol, f"BN(bf16 act) mismatch: {err} (tol {tol})"


if __name__ == "__main__":
    key = jax.random.PRNGKey(0)
    k1, k2 = jax.random.split(key)
    # Recompute variant (2*Cin <= Cout): no activation intermediate at all.
    _run_case(2, 4, 8, 16, 16, key=k1)
    # Store variant (2*Cin > Cout): bf16 activation intermediate + affine pass.
    _run_case(2, 8, 8, 16, 16, key=k2)
    print("KERNEL_OK")
</pallas_src>

<mosaic_0001>
module attributes {stable_mosaic.version = 11 : i64} {
  func.func @_conv_affine_kernel(%arg0: i32, %arg1: memref<1x4x9x9x4xbf16, #tpu.memory_space<vmem>>, %arg2: memref<3x3x4x8xbf16, #tpu.memory_space<vmem>>, %arg3: memref<1x8xf32, #tpu.memory_space<vmem>>, %arg4: memref<1x8xf32, #tpu.memory_space<vmem>>, %arg5: memref<1x8xf32, #tpu.memory_space<vmem>>, %arg6: memref<64x8xf32, #tpu.memory_space<vmem>>) attributes {dimension_semantics = [#tpu.dimension_semantics<parallel>], iteration_bounds = array<i64: 2>, scalar_prefetch = 0 : i64, scratch_operands = 0 : i64, tpu.core_type = #tpu.core_type<tc>, window_params = [{transform_indices = @transform_0, window_bounds = array<i64: 1, 4, 9, 9, 4>}, {pipeline_mode = #tpu.pipeline_mode<synchronous>, transform_indices = @transform_1, window_bounds = array<i64: 3, 3, 4, 8>}, {pipeline_mode = #tpu.pipeline_mode<synchronous>, transform_indices = @transform_2, window_bounds = array<i64: 1, 8>}, {pipeline_mode = #tpu.pipeline_mode<synchronous>, transform_indices = @transform_3, window_bounds = array<i64: 1, 8>}, {pipeline_mode = #tpu.pipeline_mode<synchronous>, transform_indices = @transform_4, window_bounds = array<i64: 1, 8>}, {transform_indices = @transform_5, window_bounds = array<i64: 64, 8>}]} {
    %cst = arith.constant 0.000000e+00 : f32
    %0 = vector.broadcast %cst : f32 to vector<64x8xf32>
    %c0 = arith.constant 0 : index
    %c0_0 = arith.constant 0 : index
    %c0_1 = arith.constant 0 : index
    %c0_2 = arith.constant 0 : index
    %c0_3 = arith.constant 0 : index
    %1 = vector.load %arg1[%c0, %c0_0, %c0_1, %c0_2, %c0_3] : memref<1x4x9x9x4xbf16, #tpu.memory_space<vmem>>, vector<1x1x8x8x4xbf16>
    %2 = vector.shape_cast %1 : vector<1x1x8x8x4xbf16> to vector<1x8x8x4xbf16>
    %3 = vector.shape_cast %2 : vector<1x8x8x4xbf16> to vector<64x4xbf16>
    %c0_4 = arith.constant 0 : index
    %c0_5 = arith.constant 0 : index
    %c0_6 = arith.constant 0 : index
    %c0_7 = arith.constant 0 : index
    %4 = vector.load %arg2[%c0_4, %c0_5, %c0_6, %c0_7] : memref<3x3x4x8xbf16, #tpu.memory_space<vmem>>, vector<1x1x4x8xbf16>
    %5 = vector.shape_cast %4 : vector<1x1x4x8xbf16> to vector<4x8xbf16>
    %cst_8 = arith.constant dense<0.000000e+00> : vector<64x8xf32>
    %6 = tpu.matmul %3, %5, %cst_8 {dimension_numbers = #tpu.dot_dimension_numbers<[1], [0], [0], [1], [0, 0, 1, 1], [], []>} : vector<64x4xbf16>, vector<4x8xbf16>, vector<64x8xf32> -> vector<64x8xf32>
    %7 = arith.addf %0, %6 : vector<64x8xf32>
    %c0_9 = arith.constant 0 : index
    %c1 = arith.constant 1 : index
    %c0_10 = arith.constant 0 : index
    %c0_11 = arith.constant 0 : index
    %c0_12 = arith.constant 0 : index
    %8 = vector.load %arg1[%c0_9, %c1, %c0_10, %c0_11, %c0_12] : memref<1x4x9x9x4xbf16, #tpu.memory_space<vmem>>, vector<1x1x8x8x4xbf16>
    %9 = vector.shape_cast %8 : vector<1x1x8x8x4xbf16> to vector<1x8x8x4xbf16>
    %10 = vector.shape_cast %9 : vector<1x8x8x4xbf16> to vector<64x4xbf16>
    %c0_13 = arith.constant 0 : index
    %c1_14 = arith.constant 1 : index
    %c0_15 = arith.constant 0 : index
    %c0_16 = arith.constant 0 : index
    %11 = vector.load %arg2[%c0_13, %c1_14, %c0_15, %c0_16] : memref<3x3x4x8xbf16, #tpu.memory_space<vmem>>, vector<1x1x4x8xbf16>
    %12 = vector.shape_cast %11 : vector<1x1x4x8xbf16> to vector<4x8xbf16>
    %cst_17 = arith.constant dense<0.000000e+00> : vector<64x8xf32>
    %13 = tpu.matmul %10, %12, %cst_17 {dimension_numbers = #tpu.dot_dimension_numbers<[1], [0], [0], [1], [0, 0, 1, 1], [], []>} : vector<64x4xbf16>, vector<4x8xbf16>, vector<64x8xf32> -> vector<64x8xf32>
    %14 = arith.addf %7, %13 : vector<64x8xf32>
    %c0_18 = arith.constant 0 : index
    %c0_19 = arith.constant 0 : index
    %c0_20 = arith.constant 0 : index
    %c1_21 = arith.constant 1 : index
    %c0_22 = arith.constant 0 : index
    %15 = vector.load %arg1[%c0_18, %c0_19, %c0_20, %c1_21, %c0_22] : memref<1x4x9x9x4xbf16, #tpu.memory_space<vmem>>, vector<1x1x8x8x4xbf16>
    %16 = vector.shape_cast %15 : vector<1x1x8x8x4xbf16> to vector<1x8x8x4xbf16>
    %17 = vector.shape_cast %16 : vector<1x8x8x4xbf16> to vector<64x4xbf16>
    %c0_23 = arith.constant 0 : index
    %c2 = arith.constant 2 : index
    %c0_24 = arith.constant 0 : index
    %c0_25 = arith.constant 0 : index
    %18 = vector.load %arg2[%c0_23, %c2, %c0_24, %c0_25] : memref<3x3x4x8xbf16, #tpu.memory_space<vmem>>, vector<1x1x4x8xbf16>
    %19 = vector.shape_cast %18 : vector<1x1x4x8xbf16> to vector<4x8xbf16>
    %cst_26 = arith.constant dense<0.000000e+00> : vector<64x8xf32>
    %20 = tpu.matmul %17, %19, %cst_26 {dimension_numbers = #tpu.dot_dimension_numbers<[1], [0], [0], [1], [0, 0, 1, 1], [], []>} : vector<64x4xbf16>, vector<4x8xbf16>, vector<64x8xf32> -> vector<64x8xf32>
    %21 = arith.addf %14, %20 : vector<64x8xf32>
    %c0_27 = arith.constant 0 : index
    %c2_28 = arith.constant 2 : index
    %c0_29 = arith.constant 0 : index
    %c0_30 = arith.constant 0 : index
    %c0_31 = arith.constant 0 : index
    %22 = vector.load %arg1[%c0_27, %c2_28, %c0_29, %c0_30, %c0_31] : memref<1x4x9x9x4xbf16, #tpu.memory_space<vmem>>, vector<1x1x8x8x4xbf16>
    %23 = vector.shape_cast %22 : vector<1x1x8x8x4xbf16> to vector<1x8x8x4xbf16>
    %24 = vector.shape_cast %23 : vector<1x8x8x4xbf16> to vector<64x4xbf16>
    %c1_32 = arith.constant 1 : index
    %c0_33 = arith.constant 0 : index
    %c0_34 = arith.constant 0 : index
    %c0_35 = arith.constant 0 : index
    %25 = vector.load %arg2[%c1_32, %c0_33, %c0_34, %c0_35] : memref<3x3x4x8xbf16, #tpu.memory_space<vmem>>, vector<1x1x4x8xbf16>
    %26 = vector.shape_cast %25 : vector<1x1x4x8xbf16> to vector<4x8xbf16>
    %cst_36 = arith.constant dense<0.000000e+00> : vector<64x8xf32>
    %27 = tpu.matmul %24, %26, %cst_36 {dimension_numbers = #tpu.dot_dimension_numbers<[1], [0], [0], [1], [0, 0, 1, 1], [], []>} : vector<64x4xbf16>, vector<4x8xbf16>, vector<64x8xf32> -> vector<64x8xf32>
    %28 = arith.addf %21, %27 : vector<64x8xf32>
    %c0_37 = arith.constant 0 : index
    %c3 = arith.constant 3 : index
    %c0_38 = arith.constant 0 : index
    %c0_39 = arith.constant 0 : index
    %c0_40 = arith.constant 0 : index
    %29 = vector.load %arg1[%c0_37, %c3, %c0_38, %c0_39, %c0_40] : memref<1x4x9x9x4xbf16, #tpu.memory_space<vmem>>, vector<1x1x8x8x4xbf16>
    %30 = vector.shape_cast %29 : vector<1x1x8x8x4xbf16> to vector<1x8x8x4xbf16>
    %31 = vector.shape_cast %30 : vector<1x8x8x4xbf16> to vector<64x4xbf16>
    %c1_41 = arith.constant 1 : index
    %c1_42 = arith.constant 1 : index
    %c0_43 = arith.constant 0 : index
    %c0_44 = arith.constant 0 : index
    %32 = vector.load %arg2[%c1_41, %c1_42, %c0_43, %c0_44] : memref<3x3x4x8xbf16, #tpu.memory_space<vmem>>, vector<1x1x4x8xbf16>
    %33 = vector.shape_cast %32 : vector<1x1x4x8xbf16> to vector<4x8xbf16>
    %cst_45 = arith.constant dense<0.000000e+00> : vector<64x8xf32>
    %34 = tpu.matmul %31, %33, %cst_45 {dimension_numbers = #tpu.dot_dimension_numbers<[1], [0], [0], [1], [0, 0, 1, 1], [], []>} : vector<64x4xbf16>, vector<4x8xbf16>, vector<64x8xf32> -> vector<64x8xf32>
    %35 = arith.addf %28, %34 : vector<64x8xf32>
    %c0_46 = arith.constant 0 : index
    %c2_47 = arith.constant 2 : index
    %c0_48 = arith.constant 0 : index
    %c1_49 = arith.constant 1 : index
    %c0_50 = arith.constant 0 : index
    %36 = vector.load %arg1[%c0_46, %c2_47, %c0_48, %c1_49, %c0_50] : memref<1x4x9x9x4xbf16, #tpu.memory_space<vmem>>, vector<1x1x8x8x4xbf16>
    %37 = vector.shape_cast %36 : vector<1x1x8x8x4xbf16> to vector<1x8x8x4xbf16>
    %38 = vector.shape_cast %37 : vector<1x8x8x4xbf16> to vector<64x4xbf16>
    %c1_51 = arith.constant 1 : index
    %c2_52 = arith.constant 2 : index
    %c0_53 = arith.constant 0 : index
    %c0_54 = arith.constant 0 : index
    %39 = vector.load %arg2[%c1_51, %c2_52, %c0_53, %c0_54] : memref<3x3x4x8xbf16, #tpu.memory_space<vmem>>, vector<1x1x4x8xbf16>
    %40 = vector.shape_cast %39 : vector<1x1x4x8xbf16> to vector<4x8xbf16>
    %cst_55 = arith.constant dense<0.000000e+00> : vector<64x8xf32>
    %41 = tpu.matmul %38, %40, %cst_55 {dimension_numbers = #tpu.dot_dimension_numbers<[1], [0], [0], [1], [0, 0, 1, 1], [], []>} : vector<64x4xbf16>, vector<4x8xbf16>, vector<64x8xf32> -> vector<64x8xf32>
    %42 = arith.addf %35, %41 : vector<64x8xf32>
    %c0_56 = arith.constant 0 : index
    %c0_57 = arith.constant 0 : index
    %c1_58 = arith.constant 1 : index
    %c0_59 = arith.constant 0 : index
    %c0_60 = arith.constant 0 : index
    %43 = vector.load %arg1[%c0_56, %c0_57, %c1_58, %c0_59, %c0_60] : memref<1x4x9x9x4xbf16, #tpu.memory_space<vmem>>, vector<1x1x8x8x4xbf16>
    %44 = vector.shape_cast %43 : vector<1x1x8x8x4xbf16> to vector<1x8x8x4xbf16>
    %45 = vector.shape_cast %44 : vector<1x8x8x4xbf16> to vector<64x4xbf16>
    %c2_61 = arith.constant 2 : index
    %c0_62 = arith.constant 0 : index
    %c0_63 = arith.constant 0 : index
    %c0_64 = arith.constant 0 : index
    %46 = vector.load %arg2[%c2_61, %c0_62, %c0_63, %c0_64] : memref<3x3x4x8xbf16, #tpu.memory_space<vmem>>, vector<1x1x4x8xbf16>
    %47 = vector.shape_cast %46 : vector<1x1x4x8xbf16> to vector<4x8xbf16>
    %cst_65 = arith.constant dense<0.000000e+00> : vector<64x8xf32>
    %48 = tpu.matmul %45, %47, %cst_65 {dimension_numbers = #tpu.dot_dimension_numbers<[1], [0], [0], [1], [0, 0, 1, 1], [], []>} : vector<64x4xbf16>, vector<4x8xbf16>, vector<64x8xf32> -> vector<64x8xf32>
    %49 = arith.addf %42, %48 : vector<64x8xf32>
    %c0_66 = arith.constant 0 : index
    %c1_67 = arith.constant 1 : index
    %c1_68 = arith.constant 1 : index
    %c0_69 = arith.constant 0 : index
    %c0_70 = arith.constant 0 : index
    %50 = vector.load %arg1[%c0_66, %c1_67, %c1_68, %c0_69, %c0_70] : memref<1x4x9x9x4xbf16, #tpu.memory_space<vmem>>, vector<1x1x8x8x4xbf16>
    %51 = vector.shape_cast %50 : vector<1x1x8x8x4xbf16> to vector<1x8x8x4xbf16>
    %52 = vector.shape_cast %51 : vector<1x8x8x4xbf16> to vector<64x4xbf16>
    %c2_71 = arith.constant 2 : index
    %c1_72 = arith.constant 1 : index
    %c0_73 = arith.constant 0 : index
    %c0_74 = arith.constant 0 : index
    %53 = vector.load %arg2[%c2_71, %c1_72, %c0_73, %c0_74] : memref<3x3x4x8xbf16, #tpu.memory_space<vmem>>, vector<1x1x4x8xbf16>
    %54 = vector.shape_cast %53 : vector<1x1x4x8xbf16> to vector<4x8xbf16>
    %cst_75 = arith.constant dense<0.000000e+00> : vector<64x8xf32>
    %55 = tpu.matmul %52, %54, %cst_75 {dimension_numbers = #tpu.dot_dimension_numbers<[1], [0], [0], [1], [0, 0, 1, 1], [], []>} : vector<64x4xbf16>, vector<4x8xbf16>, vector<64x8xf32> -> vector<64x8xf32>
    %56 = arith.addf %49, %55 : vector<64x8xf32>
    %c0_76 = arith.constant 0 : index
    %c0_77 = arith.constant 0 : index
    %c1_78 = arith.constant 1 : index
    %c1_79 = arith.constant 1 : index
    %c0_80 = arith.constant 0 : index
    %57 = vector.load %arg1[%c0_76, %c0_77, %c1_78, %c1_79, %c0_80] : memref<1x4x9x9x4xbf16, #tpu.memory_space<vmem>>, vector<1x1x8x8x4xbf16>
    %58 = vector.shape_cast %57 : vector<1x1x8x8x4xbf16> to vector<1x8x8x4xbf16>
    %59 = vector.shape_cast %58 : vector<1x8x8x4xbf16> to vector<64x4xbf16>
    %c2_81 = arith.constant 2 : index
    %c2_82 = arith.constant 2 : index
    %c0_83 = arith.constant 0 : index
    %c0_84 = arith.constant 0 : index
    %60 = vector.load %arg2[%c2_81, %c2_82, %c0_83, %c0_84] : memref<3x3x4x8xbf16, #tpu.memory_space<vmem>>, vector<1x1x4x8xbf16>
    %61 = vector.shape_cast %60 : vector<1x1x4x8xbf16> to vector<4x8xbf16>
    %cst_85 = arith.constant dense<0.000000e+00> : vector<64x8xf32>
    %62 = tpu.matmul %59, %61, %cst_85 {dimension_numbers = #tpu.dot_dimension_numbers<[1], [0], [0], [1], [0, 0, 1, 1], [], []>} : vector<64x4xbf16>, vector<4x8xbf16>, vector<64x8xf32> -> vector<64x8xf32>
    %63 = arith.addf %56, %62 : vector<64x8xf32>
    %c0_86 = arith.constant 0 : index
    %c0_87 = arith.constant 0 : index
    %64 = vector.load %arg3[%c0_86, %c0_87] : memref<1x8xf32, #tpu.memory_space<vmem>>, vector<1x8xf32>
    %65 = vector.broadcast %64 : vector<1x8xf32> to vector<64x8xf32>
    %66 = arith.addf %63, %65 : vector<64x8xf32>
    %cst_88 = arith.constant 0.000000e+00 : f32
    %67 = vector.broadcast %cst_88 : f32 to vector<64x8xf32>
    %68 = arith.cmpf oge, %66, %67 : vector<64x8xf32>
    %cst_89 = arith.constant 2.000000e-01 : f32
    %69 = vector.broadcast %cst_89 : f32 to vector<64x8xf32>
    %70 = arith.mulf %69, %66 : vector<64x8xf32>
    %71 = arith.select %68, %66, %70 : vector<64x8xi1>, vector<64x8xf32>
    %c0_90 = arith.constant 0 : index
    %c0_91 = arith.constant 0 : index
    %72 = vector.load %arg4[%c0_90, %c0_91] : memref<1x8xf32, #tpu.memory_space<vmem>>, vector<1x8xf32>
    %73 = vector.broadcast %72 : vector<1x8xf32> to vector<64x8xf32>
    %74 = arith.mulf %71, %73 : vector<64x8xf32>
    %c0_92 = arith.constant 0 : index
    %c0_93 = arith.constant 0 : index
    %75 = vector.load %arg5[%c0_92, %c0_93] : memref<1x8xf32, #tpu.memory_space<vmem>>, vector<1x8xf32>
    %76 = vector.broadcast %75 : vector<1x8xf32> to vector<64x8xf32>
    %77 = arith.addf %74, %76 : vector<64x8xf32>
    %c0_94 = arith.constant 0 : index
    %c0_95 = arith.constant 0 : index
    %78 = vector.load %arg6[%c0_94, %c0_95] : memref<64x8xf32, #tpu.memory_space<vmem>>, vector<64x8xf32>
    tpu.vector_store %arg6[%c0_94, %c0_95], %77 {strides = array<i32>} : memref<64x8xf32, #tpu.memory_space<vmem>>, vector<64x8xf32>,
    return
  }
  func.func @transform_0(%arg0: i32) -> (i32, i32, i32, i32, i32) {
    %c0_i32 = arith.constant 0 : i32
    %c0_i32_0 = arith.constant 0 : i32
    %c0_i32_1 = arith.constant 0 : i32
    %c0_i32_2 = arith.constant 0 : i32
    %c0_i32_3 = arith.constant 0 : i32
    return %arg0, %c0_i32, %c0_i32_0, %c0_i32_1, %c0_i32_2 : i32, i32, i32, i32, i32
  }
  func.func @transform_1(%arg0: i32) -> (i32, i32, i32, i32) {
    %c0_i32 = arith.constant 0 : i32
    %c0_i32_0 = arith.constant 0 : i32
    %c0_i32_1 = arith.constant 0 : i32
    %c0_i32_2 = arith.constant 0 : i32
    %c0_i32_3 = arith.constant 0 : i32
    return %c0_i32, %c0_i32_0, %c0_i32_1, %c0_i32_2 : i32, i32, i32, i32
  }
  func.func @transform_2(%arg0: i32) -> (i32, i32) {
    %c0_i32 = arith.constant 0 : i32
    %c0_i32_0 = arith.constant 0 : i32
    %c0_i32_1 = arith.constant 0 : i32
    return %c0_i32, %c0_i32_0 : i32, i32
  }
  func.func @transform_3(%arg0: i32) -> (i32, i32) {
    %c0_i32 = arith.constant 0 : i32
    %c0_i32_0 = arith.constant 0 : i32
    %c0_i32_1 = arith.constant 0 : i32
    return %c0_i32, %c0_i32_0 : i32, i32
  }
  func.func @transform_4(%arg0: i32) -> (i32, i32) {
    %c0_i32 = arith.constant 0 : i32
    %c0_i32_0 = arith.constant 0 : i32
    %c0_i32_1 = arith.constant 0 : i32
    return %c0_i32, %c0_i32_0 : i32, i32
  }
  func.func @transform_5(%arg0: i32) -> (i32, i32) {
    %c0_i32 = arith.constant 0 : i32
    %c0_i32_0 = arith.constant 0 : i32
    return %arg0, %c0_i32 : i32, i32
  }
}

</mosaic_0001>

<llo_original>
// kernel: downsample_forward.1
$region0: #{downsample_forward.1}
  #allocation0 [shape = 'u32[]', space=smem, size = 0x4, offset = 0x4, fixed_abs, tag = 'smem constant byte address 0x4 - core index']
  #allocation1 [shape = 'u32[144,128]{1,0:T(1,128)}', space=vmem, size = 0x12000, scoped, tag = 'internal scratch']
  %s0 = inlined_call_operand.vmem [shape: bf16[2,4,9,9,4], index: 0, kind: input, shape index: {}]
  %s1 = inlined_call_operand.vmem [shape: bf16[3,3,4,8], index: 1, kind: input, shape index: {}]
  %s2 = inlined_call_operand.vmem [shape: f32[1,8], index: 2, kind: input, shape index: {}]
  %s3 = inlined_call_operand.vmem [shape: f32[1,8], index: 3, kind: input, shape index: {}]
  %s4 = inlined_call_operand.vmem [shape: f32[1,8], index: 4, kind: input, shape index: {}]
  %s5 = inlined_call_operand.vmem [shape: f32[128,8], index: 5, kind: output, shape index: {}]
  %s6 = sld [smem:[#allocation0]]
  $region53: #{downsample_forward.1} parent=0
    _
  %s8 = ssub.s32 1, %s6
  %s9 = scalar_select 0, %s8, %s6
  loop: start=0, step=1, limit=4
  $region2: #{downsample_forward.1} parent=0 // loop_pre_header
    _
  $region3: #{downsample_forward.1} parent=0 // loop_header
    %s11 = sphi 0, %s15
    %p12 = scmp.ge.s32.totalorder %s11, 4
    %s21 = sphi 0, %s23
    %s24 = sphi 0, %s21
    %s25 = sphi 0, %s24
    %s41 = sphi 0, %s25
    %s45 = sphi 0, %s45
    %s47 = sphi 0, %s45
    %s48 = sphi 0, %s47
    %s62 = sphi 0, %s48
    %s66 = sphi 0, %s66
    %s68 = sphi 0, %s66
    %s69 = sphi 0, %s68
    %s83 = sphi 0, %s69
    %s87 = sphi 0, %s87
    %s89 = sphi 0, %s87
    %s90 = sphi 0, %s89
    %s104 = sphi 0, %s90
    %s108 = sphi 0, %s108
    %s110 = sphi 0, %s108
    %s111 = sphi 0, %s110
    %s125 = sphi 0, %s111
    %s131 = sphi 0, %s133
    %s134 = sphi 0, %s131
    %s135 = sphi 0, %s134
    %s151 = sphi 0, %s135
  $region4: #{downsample_forward.1} parent=0 // loop_header_branch
    %14 = sbr.rel (%p12) target = $region8
  $region5: #{downsample_forward.1} parent=0 // loop_body
    %s16 = ssub.s32 %s11, 1
    %s17 = ssub.s32 %s11, 2
    %s18 = sadd.s32 %s11, 1
    %s19 = ssub.s32 %s11, %s18
    %p20 = scmp.eq.s32.totalorder %s19, 0
    %s22 = sadd.s32 %s21, 1
    %s23 = scalar_select %p20, %s21, %s22
    %p26 = pneg %p20
    %p27 = scmp.eq.s32.totalorder %s11, 1
    %p28 = por %p26, %p27
    %p29 = scmp.ne.s32.totalorder %s21, %s24
    %p30 = scmp.eq.s32.totalorder %s11, 0
    %p31 = por %p29, %p30
    %p32 = scmp.ne.s32.totalorder %s21, %s24
    %p33 = scmp.eq.s32.totalorder %s16, 1
    %p34 = por %p32, %p33
    %p35 = scmp.ne.s32.totalorder %s24, %s25
    %p36 = scmp.eq.s32.totalorder %s16, 0
    %p37 = por %p35, %p36
    %p38 = scmp.ne.s32.totalorder %s24, %s25
    %p39 = scmp.eq.s32.totalorder %s17, 1
    %p40 = por %p38, %p39
    %p42 = scmp.ne.s32.totalorder %s25, %s41
    %p43 = scmp.eq.s32.totalorder %s17, 0
    %p44 = por %p42, %p43
    %s46 = sadd.s32 %s45, 1
    %p49 = scmp.eq.s32.totalorder %s11, 1
    %p50 = scmp.ne.s32.totalorder %s45, %s47
    %p51 = scmp.eq.s32.totalorder %s11, 0
    %p52 = por %p50, %p51
    %p53 = scmp.ne.s32.totalorder %s45, %s47
    %p54 = scmp.eq.s32.totalorder %s16, 1
    %p55 = por %p53, %p54
    %p56 = scmp.ne.s32.totalorder %s47, %s48
    %p57 = scmp.eq.s32.totalorder %s16, 0
    %p58 = por %p56, %p57
    %p59 = scmp.ne.s32.totalorder %s47, %s48
    %p60 = scmp.eq.s32.totalorder %s17, 1
    %p61 = por %p59, %p60
    %p63 = scmp.ne.s32.totalorder %s48, %s62
    %p64 = scmp.eq.s32.totalorder %s17, 0
    %p65 = por %p63, %p64
    %s67 = sadd.s32 %s66, 1
    %p70 = scmp.eq.s32.totalorder %s11, 1
    %p71 = scmp.ne.s32.totalorder %s66, %s68
    %p72 = scmp.eq.s32.totalorder %s11, 0
    %p73 = por %p71, %p72
    %p74 = scmp.ne.s32.totalorder %s66, %s68
    %p75 = scmp.eq.s32.totalorder %s16, 1
    %p76 = por %p74, %p75
    %p77 = scmp.ne.s32.totalorder %s68, %s69
    %p78 = scmp.eq.s32.totalorder %s16, 0
    %p79 = por %p77, %p78
    %p80 = scmp.ne.s32.totalorder %s68, %s69
    %p81 = scmp.eq.s32.totalorder %s17, 1
    %p82 = por %p80, %p81
    %p84 = scmp.ne.s32.totalorder %s69, %s83
    %p85 = scmp.eq.s32.totalorder %s17, 0
    %p86 = por %p84, %p85
    %s88 = sadd.s32 %s87, 1
    %p91 = scmp.eq.s32.totalorder %s11, 1
    %p92 = scmp.ne.s32.totalorder %s87, %s89
    %p93 = scmp.eq.s32.totalorder %s11, 0
    %p94 = por %p92, %p93
    %p95 = scmp.ne.s32.totalorder %s87, %s89
    %p96 = scmp.eq.s32.totalorder %s16, 1
    %p97 = por %p95, %p96
    %p98 = scmp.ne.s32.totalorder %s89, %s90
    %p99 = scmp.eq.s32.totalorder %s16, 0
    %p100 = por %p98, %p99
    %p101 = scmp.ne.s32.totalorder %s89, %s90
    %p102 = scmp.eq.s32.totalorder %s17, 1
    %p103 = por %p101, %p102
    %p105 = scmp.ne.s32.totalorder %s90, %s104
    %p106 = scmp.eq.s32.totalorder %s17, 0
    %p107 = por %p105, %p106
    %s109 = sadd.s32 %s108, 1
    %p112 = scmp.eq.s32.totalorder %s11, 1
    %p113 = scmp.ne.s32.totalorder %s108, %s110
    %p114 = scmp.eq.s32.totalorder %s11, 0
    %p115 = por %p113, %p114
    %p116 = scmp.ne.s32.totalorder %s108, %s110
    %p117 = scmp.eq.s32.totalorder %s16, 1
    %p118 = por %p116, %p117
    %p119 = scmp.ne.s32.totalorder %s110, %s111
    %p120 = scmp.eq.s32.totalorder %s16, 0
    %p121 = por %p119, %p120
    %p122 = scmp.ne.s32.totalorder %s110, %s111
    %p123 = scmp.eq.s32.totalorder %s17, 1
    %p124 = por %p122, %p123
    %p126 = scmp.ne.s32.totalorder %s111, %s125
    %p127 = scmp.eq.s32.totalorder %s17, 0
    %p128 = por %p126, %p127
    %s129 = ssub.s32 %s11, %s18
    %p130 = scmp.eq.s32.totalorder %s129, 0
    %s132 = sadd.s32 %s131, 1
    %s133 = scalar_select %p130, %s131, %s132
    %p136 = pneg %p130
    %p137 = scmp.eq.s32.totalorder %s11, 1
    %p138 = por %p136, %p137
    %p139 = scmp.ne.s32.totalorder %s131, %s134
    %p140 = scmp.eq.s32.totalorder %s11, 0
    %p141 = por %p139, %p140
    %p142 = scmp.ne.s32.totalorder %s131, %s134
    %p143 = scmp.eq.s32.totalorder %s16, 1
    %p144 = por %p142, %p143
    %p145 = scmp.ne.s32.totalorder %s134, %s135
    %p146 = scmp.eq.s32.totalorder %s16, 0
    %p147 = por %p145, %p146
    %p148 = scmp.ne.s32.totalorder %s134, %s135
    %p149 = scmp.eq.s32.totalorder %s17, 1
    %p150 = por %p148, %p149
    %p152 = scmp.ne.s32.totalorder %s135, %s151
    %p153 = scmp.eq.s32.totalorder %s17, 0
    %p154 = por %p152, %p153
    %p155 = scmp.le.s32.totalorder 1, %s11
    %p156 = scmp.lt.s32.totalorder %s11, 3
    %p157 = pnand %p155, %p156
    %p158 = pneg %p157
    // Predicated region
    $region9: #{downsample_forward.1} parent=5 // pred_check
      _
    $region10: #{downsample_forward.1} parent=5 // pred_check_branch
      %160 = sbr.rel (%p157) target = $region12
    $region11: #{downsample_forward.1} parent=5 // pred_region
      %s161 = ssub.s32 %s11, 1
      // Predicated region
      $region13: #{downsample_forward.1} parent=11 // pred_check
        %p162 = pneg %p58
      $region14: #{downsample_forward.1} parent=11 // pred_check_branch
        %164 = sbr.rel (%p162) target = $region16
      $region15: #{downsample_forward.1} parent=11 // pred_region
        _
      $region16: #{downsample_forward.1} parent=11 // pred_fallthru
        _
      // Predicated region
      $region17: #{downsample_forward.1} parent=11 // pred_check
        %p165 = pneg %p79
      $region18: #{downsample_forward.1} parent=11 // pred_check_branch
        %167 = sbr.rel (%p165) target = $region20
      $region19: #{downsample_forward.1} parent=11 // pred_region
        _
      $region20: #{downsample_forward.1} parent=11 // pred_fallthru
        _
      // Predicated region
      $region21: #{downsample_forward.1} parent=11 // pred_check
        %p168 = pneg %p100
      $region22: #{downsample_forward.1} parent=11 // pred_check_branch
        %170 = sbr.rel (%p168) target = $region24
      $region23: #{downsample_forward.1} parent=11 // pred_region
        _
      $region24: #{downsample_forward.1} parent=11 // pred_fallthru
        _
      // Predicated region
      $region25: #{downsample_forward.1} parent=11 // pred_check
        %p171 = pneg %p121
      $region26: #{downsample_forward.1} parent=11 // pred_check_branch
        %173 = sbr.rel (%p171) target = $region28
      $region27: #{downsample_forward.1} parent=11 // pred_region
        _
      $region28: #{downsample_forward.1} parent=11 // pred_fallthru
        _
    $region12: #{downsample_forward.1} parent=5 // pred_fallthru
      _
    %p174 = scmp.lt.s32.totalorder %s11, 2
    // Predicated region
    $region29: #{downsample_forward.1} parent=5 // pred_check
      %p175 = pneg %p174
    $region30: #{downsample_forward.1} parent=5 // pred_check_branch
      %177 = sbr.rel (%p175) target = $region32
    $region31: #{downsample_forward.1} parent=5 // pred_region
      // Predicated region
      $region33: #{downsample_forward.1} parent=31 // pred_check
        %p178 = pneg %p31
      $region34: #{downsample_forward.1} parent=31 // pred_check_branch
        %180 = sbr.rel (%p178) target = $region36
      $region35: #{downsample_forward.1} parent=31 // pred_region
        %p181 = scmp.lt.s32.totalorder %s11, 1
        %s182 = scalar_select %p181, %s11, 1
        %s183 = smul.addr %s182, 72
        %s184 = smul.addr %s183, 4
        %s185 = scalar_lea.vmem %s0, %s184
      $region36: #{downsample_forward.1} parent=31 // pred_fallthru
        _
    $region32: #{downsample_forward.1} parent=5 // pred_fallthru
      _
    %p186 = scmp.le.s32.totalorder 1, %s11
    %p187 = scmp.lt.s32.totalorder %s11, 3
    %p188 = pnand %p186, %p187
    %p189 = pneg %p188
    // Predicated region
    $region37: #{downsample_forward.1} parent=5 // pred_check
      _
    $region38: #{downsample_forward.1} parent=5 // pred_check_branch
      %191 = sbr.rel (%p188) target = $region40
    $region39: #{downsample_forward.1} parent=5 // pred_region
      %s192 = ssub.s32 %s11, 1
      %p193 = scmp.lt.s32.totalorder %s16, 1
      %s194 = scalar_select %p193, %s16, 1
      %s195 = smul.addr %s194, 72
      %s196 = smul.addr %s195, 4
      %s197 = scalar_lea.vmem %s0, %s196
      %p198 = pneg %p37
      %p199 = pneg %p34
      %p200 = pneg %p58
      %p201 = pneg %p55
      %p202 = pneg %p79
      %p203 = pneg %p76
      %p204 = pneg %p100
      %p205 = pneg %p97
      %p206 = pneg %p121
      %p207 = pneg %p118
      %p208 = pneg %p147
      %p209 = pneg %p144
      %s210 = smul.u32 8, %s16
      %p211 = scmp.lt.s32.totalorder %s210, 15
      %s212 = scalar_select %p211, %s210, 15
      %s213 = smul.addr %s212, 8
      %s214 = scalar_lea.vmem %s5, %s213
      %p215 = scmp.lt.s32.totalorder %s16, 1
      %s216 = scalar_select %p215, %s16, 1
      %s217 = smul.addr %s216, 72
      %s218 = smul.addr %s217, 4
      %s219 = scalar_lea.vmem %s0, %s218
      %s220 = smul.u32 8, %s16
      %p221 = scmp.lt.s32.totalorder %s220, 15
      %s222 = scalar_select %p221, %s220, 15
      %s223 = smul.addr %s222, 8
      %s224 = scalar_lea.vmem %s5, %s223
      %s225 = smul.u32 8, %s16
      %v227 = vld [vmem:[%s219] sm:$0xf]
      %v228 = vld [vmem:[%s219 + $0x8] sm:$0xf]
      %v229 = vld [vmem:[%s219 + $0x10] sm:$0xf]
      %v230 = vld [vmem:[%s219 + $0x18] sm:$0xf]
      %v231 = vld [vmem:[%s219 + $0x20] sm:$0xf]
      %v232 = vld [vmem:[%s219 + $0x28] sm:$0xf]
      %v233 = vld [vmem:[%s219 + $0x30] sm:$0xf]
      %v234 = vld [vmem:[%s219 + $0x38] sm:$0xf]
      %v235 = vld [vmem:[%s1] sm:$0x3]
      %s236 = scalar_lea.vmem %s219, 72
      %v237 = vld [vmem:[%s236] sm:$0xf]
      %v238 = vld [vmem:[%s236 + $0x8] sm:$0xf]
      %v239 = vld [vmem:[%s236 + $0x10] sm:$0xf]
      %v240 = vld [vmem:[%s236 + $0x18] sm:$0xf]
      %v241 = vld [vmem:[%s236 + $0x20] sm:$0xf]
      %v242 = vld [vmem:[%s236 + $0x28] sm:$0xf]
      %v243 = vld [vmem:[%s236 + $0x30] sm:$0xf]
      %v244 = vld [vmem:[%s236 + $0x38] sm:$0xf]
      %s245 = scalar_lea.vmem %s1, 2
      %v246 = vld [vmem:[%s245] sm:$0x3]
      %v255 = vunpack.c.l.b16 %v237
      %v256 = vunpack.c.l.b16 %v238
      %v257 = vunpack.c.l.b16 %v239
      %v258 = vunpack.c.l.b16 %v240
      %v259 = vunpack.c.l.b16 %v241
      %v260 = vunpack.c.l.b16 %v242
      %v261 = vunpack.c.l.b16 %v243
      %v262 = vunpack.c.l.b16 %v244
      %v263 = vpack.c.b16 %v256, %v255
      %v264 = vpack.c.b16 %v258, %v257
      %v265 = vpack.c.b16 %v260, %v259
      %v266 = vpack.c.b16 %v262, %v261
      %vm267 = vcmask 31744
      %v269 = vsel %vm267, %v263, 0
      %v272 = vsel %vm267, %v264, 0
      %v275 = vsel %vm267, %v265, 0
      %v278 = vsel %vm267, %v266, 0
      %vm280 = vcmask 1041408
      %v282 = vsel %vm280, %v246, 0
      %284 = vmatprep.subr.bf16.mxu0 0
      %285 = vmatpush1.bf16.msra.mxu0 0
      %286 = vmatprep.subr.bf16.mxu0 0
      %287 = vmatpush1.bf16.msra.mxu0 0
      %288 = vmatprep.subr.bf16.mxu0 0
      %289 = vmatpush1.bf16.msra.mxu0 0
      %290 = vmatprep.subr.bf16.mxu0 0
      %291 = vmatpush1.bf16.msra.mxu0 0
      %292 = vmatprep.subr.bf16.mxu0 0
      %293 = vmatpush1.bf16.msra.mxu0 0
      %294 = vmatprep.subr.bf16.mxu0 0
      %295 = vmatpush1.bf16.msra.mxu0 0
      %296 = vmatprep.subr.bf16.mxu0 0
      %297 = vmatpush1.bf16.msra.mxu0 0
      %298 = vmatprep.subr.bf16.mxu0 0
      %299 = vmatpush1.bf16.msra.mxu0 %v282
      %300 = vmatprep.subr.bf16.mxu0 0
      %301 = vmatpush2.bf16.msra.mxu0 0
      %302 = vmatprep.subr.bf16.mxu0 0
      %303 = vmatpush2.bf16.msra.mxu0 0
      %304 = vmatprep.subr.bf16.mxu0 0
      %305 = vmatpush2.bf16.msra.mxu0 0
      %306 = vmatprep.subr.bf16.mxu0 0
      %307 = vmatpush2.bf16.msra.mxu0 0
      %308 = vmatprep.subr.bf16.mxu0 0
      %309 = vmatpush2.bf16.msra.mxu0 0
      %310 = vmatprep.subr.bf16.mxu0 0
      %311 = vmatpush2.bf16.msra.mxu0 0
      %312 = vmatprep.subr.bf16.mxu0 0
      %313 = vmatpush2.bf16.msra.mxu0 0
      %314 = vmatprep.subr.bf16.mxu0 0
      %315 = vmatpush2.bf16.msra.mxu0 0
      %316 = vmatprep.mubr.bf16.mxu0 0
      %317 = vmatmul.mubr.bf16.gmra.mxu0 %v269
      %v318 = vpop.f32.mrf.mxu0
      %v319 = vadd.f32 0.0, %v318
      %v320 = vpop.f32.mrf.mxu0
      %v321 = vpop.f32.mrf.mxu0
      %v322 = vadd.f32 0.0, %v321
      %v323 = vpop.f32.mrf.mxu0
      %324 = vmatprep.mubr.bf16.mxu0 0
      %325 = vmatmul.mubr.bf16.gmra.mxu0 %v272
      %v326 = vpop.f32.mrf.mxu0
      %v327 = vadd.f32 0.0, %v326
      %v328 = vpop.f32.mrf.mxu0
      %v329 = vpop.f32.mrf.mxu0
      %v330 = vadd.f32 0.0, %v329
      %v331 = vpop.f32.mrf.mxu0
      %332 = vmatprep.mubr.bf16.mxu0 0
      %333 = vmatmul.mubr.bf16.gmra.mxu0 %v275
      %v334 = vpop.f32.mrf.mxu0
      %v335 = vadd.f32 0.0, %v334
      %v336 = vpop.f32.mrf.mxu0
      %v337 = vpop.f32.mrf.mxu0
      %v338 = vadd.f32 0.0, %v337
      %v339 = vpop.f32.mrf.mxu0
      %340 = vmatprep.mubr.bf16.mxu0 0
      %341 = vmatmul.mubr.bf16.gmra.mxu0 %v278
      %v342 = vpop.f32.mrf.mxu0
      %v343 = vadd.f32 0.0, %v342
      %v344 = vpop.f32.mrf.mxu0
      %v345 = vpop.f32.mrf.mxu0
      %v346 = vadd.f32 0.0, %v345
      %v347 = vpop.f32.mrf.mxu0
      %348 = vdwg.mxu0
      %v357 = vunpack.c.l.b16 %v227
      %v358 = vunpack.c.l.b16 %v228
      %v359 = vunpack.c.l.b16 %v229
      %v360 = vunpack.c.l.b16 %v230
      %v361 = vunpack.c.l.b16 %v231
      %v362 = vunpack.c.l.b16 %v232
      %v363 = vunpack.c.l.b16 %v233
      %v364 = vunpack.c.l.b16 %v234
      %v365 = vpack.c.b16 %v358, %v357
      %v366 = vpack.c.b16 %v360, %v359
      %v367 = vpack.c.b16 %v362, %v361
      %v368 = vpack.c.b16 %v364, %v363
      %v370 = vsel %vm267, %v365, 0
      %v373 = vsel %vm267, %v366, 0
      %v376 = vsel %vm267, %v367, 0
      %v379 = vsel %vm267, %v368, 0
      %v382 = vsel %vm280, %v235, 0
      %384 = vmatprep.subr.bf16.mxu0 0
      %385 = vmatpush1.bf16.msra.mxu0 0
      %386 = vmatprep.subr.bf16.mxu0 0
      %387 = vmatpush1.bf16.msra.mxu0 0
      %388 = vmatprep.subr.bf16.mxu0 0
      %389 = vmatpush1.bf16.msra.mxu0 0
      %390 = vmatprep.subr.bf16.mxu0 0
      %391 = vmatpush1.bf16.msra.mxu0 0
      %392 = vmatprep.subr.bf16.mxu0 0
      %393 = vmatpush1.bf16.msra.mxu0 0
      %394 = vmatprep.subr.bf16.mxu0 0
      %395 = vmatpush1.bf16.msra.mxu0 0
      %396 = vmatprep.subr.bf16.mxu0 0
      %397 = vmatpush1.bf16.msra.mxu0 0
      %398 = vmatprep.subr.bf16.mxu0 0
      %399 = vmatpush1.bf16.msra.mxu0 %v382
      %400 = vmatprep.subr.bf16.mxu0 0
      %401 = vmatpush2.bf16.msra.mxu0 0
      %402 = vmatprep.subr.bf16.mxu0 0
      %403 = vmatpush2.bf16.msra.mxu0 0
      %404 = vmatprep.subr.bf16.mxu0 0
      %405 = vmatpush2.bf16.msra.mxu0 0
      %406 = vmatprep.subr.bf16.mxu0 0
      %407 = vmatpush2.bf16.msra.mxu0 0
      %408 = vmatprep.subr.bf16.mxu0 0
      %409 = vmatpush2.bf16.msra.mxu0 0
      %410 = vmatprep.subr.bf16.mxu0 0
      %411 = vmatpush2.bf16.msra.mxu0 0
      %412 = vmatprep.subr.bf16.mxu0 0
      %413 = vmatpush2.bf16.msra.mxu0 0
      %414 = vmatprep.subr.bf16.mxu0 0
      %415 = vmatpush2.bf16.msra.mxu0 0
      %416 = vmatprep.mubr.bf16.mxu0 0
      %417 = vmatmul.mubr.bf16.gmra.mxu0 %v370
      %v418 = vpop.f32.mrf.mxu0
      %v419 = vadd.f32 %v319, %v418
      %v420 = vpop.f32.mrf.mxu0
      %v421 = vpop.f32.mrf.mxu0
      %v422 = vadd.f32 %v322, %v421
      %v423 = vpop.f32.mrf.mxu0
      %424 = vmatprep.mubr.bf16.mxu0 0
      %425 = vmatmul.mubr.bf16.gmra.mxu0 %v373
      %v426 = vpop.f32.mrf.mxu0
      %v427 = vadd.f32 %v327, %v426
      %v428 = vpop.f32.mrf.mxu0
      %v429 = vpop.f32.mrf.mxu0
      %v430 = vadd.f32 %v330, %v429
      %v431 = vpop.f32.mrf.mxu0
      %432 = vmatprep.mubr.bf16.mxu0 0
      %433 = vmatmul.mubr.bf16.gmra.mxu0 %v376
      %v434 = vpop.f32.mrf.mxu0
      %v435 = vadd.f32 %v335, %v434
      %v436 = vpop.f32.mrf.mxu0
      %v437 = vpop.f32.mrf.mxu0
      %v438 = vadd.f32 %v338, %v437
      %v439 = vpop.f32.mrf.mxu0
      %440 = vmatprep.mubr.bf16.mxu0 0
      %441 = vmatmul.mubr.bf16.gmra.mxu0 %v379
      %v442 = vpop.f32.mrf.mxu0
      %v443 = vadd.f32 %v343, %v442
      %v444 = vpop.f32.mrf.mxu0
      %v445 = vpop.f32.mrf.mxu0
      %v446 = vadd.f32 %v346, %v445
      %v447 = vpop.f32.mrf.mxu0
      %448 = vdwg.mxu0
      %v449 = vld [vmem:[%s219] sm:$0xf]
      %v450 = vld [vmem:[%s219 + $0x4] sm:$0x1]
      %v451 = vld [vmem:[%s219 + $0x8] sm:$0xf]
      %v452 = vld [vmem:[%s219 + $0xc] sm:$0x1]
      %v453 = vld [vmem:[%s219 + $0x10] sm:$0xf]
      %v454 = vld [vmem:[%s219 + $0x14] sm:$0x1]
      %v455 = vld [vmem:[%s219 + $0x18] sm:$0xf]
      %v456 = vld [vmem:[%s219 + $0x1c] sm:$0x1]
      %v457 = vld [vmem:[%s219 + $0x20] sm:$0xf]
      %v458 = vld [vmem:[%s219 + $0x24] sm:$0x1]
      %v459 = vld [vmem:[%s219 + $0x28] sm:$0xf]
      %v460 = vld [vmem:[%s219 + $0x2c] sm:$0x1]
      %v461 = vld [vmem:[%s219 + $0x30] sm:$0xf]
      %v462 = vld [vmem:[%s219 + $0x34] sm:$0x1]
      %v463 = vld [vmem:[%s219 + $0x38] sm:$0xf]
      %v464 = vld [vmem:[%s219 + $0x3c] sm:$0x1]
      %vm465 = vsmask.f32 3328
      %vm466 = vsmask.f32 7440
      %vm467 = vmor %vm465, %vm466
      %v469 = vshrl.u32 %v449, 16
      %v471 = vrot.slane %v469, 4
      %v472 = vshll.u32 %v449, 16
      %v474 = vrot.slane %v472, 5
      %v475 = vor.u32 %v471, %v474
      %v476 = vrot.slane %v475, 4
      %v478 = vshll.u32 %v450, 16
      %v480 = vrot.slane %v478, 5
      %v481 = vsel %vm467, %v476, %v480
      %v483 = vshrl.u32 %v451, 16
      %v485 = vrot.slane %v483, 4
      %v486 = vshll.u32 %v451, 16
      %v488 = vrot.slane %v486, 5
      %v489 = vor.u32 %v485, %v488
      %v490 = vrot.slane %v489, 4
      %v492 = vshll.u32 %v452, 16
      %v494 = vrot.slane %v492, 5
      %v495 = vsel %vm467, %v490, %v494
      %v497 = vshrl.u32 %v453, 16
      %v499 = vrot.slane %v497, 4
      %v500 = vshll.u32 %v453, 16
      %v502 = vrot.slane %v500, 5
      %v503 = vor.u32 %v499, %v502
      %v504 = vrot.slane %v503, 4
      %v506 = vshll.u32 %v454, 16
      %v508 = vrot.slane %v506, 5
      %v509 = vsel %vm467, %v504, %v508
      %v511 = vshrl.u32 %v455, 16
      %v513 = vrot.slane %v511, 4
      %v514 = vshll.u32 %v455, 16
      %v516 = vrot.slane %v514, 5
      %v517 = vor.u32 %v513, %v516
      %v518 = vrot.slane %v517, 4
      %v520 = vshll.u32 %v456, 16
      %v522 = vrot.slane %v520, 5
      %v523 = vsel %vm467, %v518, %v522
      %v525 = vshrl.u32 %v457, 16
      %v527 = vrot.slane %v525, 4
      %v528 = vshll.u32 %v457, 16
      %v530 = vrot.slane %v528, 5
      %v531 = vor.u32 %v527, %v530
      %v532 = vrot.slane %v531, 4
      %v534 = vshll.u32 %v458, 16
      %v536 = vrot.slane %v534, 5
      %v537 = vsel %vm467, %v532, %v536
      %v539 = vshrl.u32 %v459, 16
      %v541 = vrot.slane %v539, 4
      %v542 = vshll.u32 %v459, 16
      %v544 = vrot.slane %v542, 5
      %v545 = vor.u32 %v541, %v544
      %v546 = vrot.slane %v545, 4
      %v548 = vshll.u32 %v460, 16
      %v550 = vrot.slane %v548, 5
      %v551 = vsel %vm467, %v546, %v550
      %v553 = vshrl.u32 %v461, 16
      %v555 = vrot.slane %v553, 4
      %v556 = vshll.u32 %v461, 16
      %v558 = vrot.slane %v556, 5
      %v559 = vor.u32 %v555, %v558
      %v560 = vrot.slane %v559, 4
      %v562 = vshll.u32 %v462, 16
      %v564 = vrot.slane %v562, 5
      %v565 = vsel %vm467, %v560, %v564
      %v567 = vshrl.u32 %v463, 16
      %v569 = vrot.slane %v567, 4
      %v570 = vshll.u32 %v463, 16
      %v572 = vrot.slane %v570, 5
      %v573 = vor.u32 %v569, %v572
      %v574 = vrot.slane %v573, 4
      %v576 = vshll.u32 %v464, 16
      %v578 = vrot.slane %v576, 5
      %v579 = vsel %vm467, %v574, %v578
      %s580 = scalar_lea.vmem %s1, 4
      %v581 = vld [vmem:[%s580] sm:$0x3]
      %v582 = vunpack.c.l.b16 %v481
      %v583 = vunpack.c.l.b16 %v495
      %v584 = vunpack.c.l.b16 %v509
      %v585 = vunpack.c.l.b16 %v523
      %v586 = vunpack.c.l.b16 %v537
      %v587 = vunpack.c.l.b16 %v551
      %v588 = vunpack.c.l.b16 %v565
      %v589 = vunpack.c.l.b16 %v579
      %v590 = vpack.c.b16 %v583, %v582
      %v591 = vpack.c.b16 %v585, %v584
      %v592 = vpack.c.b16 %v587, %v586
      %v593 = vpack.c.b16 %v589, %v588
      %v595 = vsel %vm267, %v590, 0
      %v598 = vsel %vm267, %v591, 0
      %v601 = vsel %vm267, %v592, 0
      %v604 = vsel %vm267, %v593, 0
      %v607 = vsel %vm280, %v581, 0
      %609 = vmatprep.subr.bf16.mxu0 0
      %610 = vmatpush1.bf16.msra.mxu0 0
      %611 = vmatprep.subr.bf16.mxu0 0
      %612 = vmatpush1.bf16.msra.mxu0 0
      %613 = vmatprep.subr.bf16.mxu0 0
      %614 = vmatpush1.bf16.msra.mxu0 0
      %615 = vmatprep.subr.bf16.mxu0 0
      %616 = vmatpush1.bf16.msra.mxu0 0
      %617 = vmatprep.subr.bf16.mxu0 0
      %618 = vmatpush1.bf16.msra.mxu0 0
      %619 = vmatprep.subr.bf16.mxu0 0
      %620 = vmatpush1.bf16.msra.mxu0 0
      %621 = vmatprep.subr.bf16.mxu0 0
      %622 = vmatpush1.bf16.msra.mxu0 0
      %623 = vmatprep.subr.bf16.mxu0 0
      %624 = vmatpush1.bf16.msra.mxu0 %v607
      %625 = vmatprep.subr.bf16.mxu0 0
      %626 = vmatpush2.bf16.msra.mxu0 0
      %627 = vmatprep.subr.bf16.mxu0 0
      %628 = vmatpush2.bf16.msra.mxu0 0
      %629 = vmatprep.subr.bf16.mxu0 0
      %630 = vmatpush2.bf16.msra.mxu0 0
      %631 = vmatprep.subr.bf16.mxu0 0
      %632 = vmatpush2.bf16.msra.mxu0 0
      %633 = vmatprep.subr.bf16.mxu0 0
      %634 = vmatpush2.bf16.msra.mxu0 0
      %635 = vmatprep.subr.bf16.mxu0 0
      %636 = vmatpush2.bf16.msra.mxu0 0
      %637 = vmatprep.subr.bf16.mxu0 0
      %638 = vmatpush2.bf16.msra.mxu0 0
      %639 = vmatprep.subr.bf16.mxu0 0
      %640 = vmatpush2.bf16.msra.mxu0 0
      %641 = vmatprep.mubr.bf16.mxu0 0
      %642 = vmatmul.mubr.bf16.gmra.mxu0 %v595
      %v643 = vpop.f32.mrf.mxu0
      %v644 = vadd.f32 0.0, %v643
      %v645 = vpop.f32.mrf.mxu0
      %v646 = vpop.f32.mrf.mxu0
      %v647 = vadd.f32 0.0, %v646
      %v648 = vpop.f32.mrf.mxu0
      %649 = vmatprep.mubr.bf16.mxu0 0
      %650 = vmatmul.mubr.bf16.gmra.mxu0 %v598
      %v651 = vpop.f32.mrf.mxu0
      %v652 = vadd.f32 0.0, %v651
      %v653 = vpop.f32.mrf.mxu0
      %v654 = vpop.f32.mrf.mxu0
      %v655 = vadd.f32 0.0, %v654
      %v656 = vpop.f32.mrf.mxu0
      %657 = vmatprep.mubr.bf16.mxu0 0
      %658 = vmatmul.mubr.bf16.gmra.mxu0 %v601
      %v659 = vpop.f32.mrf.mxu0
      %v660 = vadd.f32 0.0, %v659
      %v661 = vpop.f32.mrf.mxu0
      %v662 = vpop.f32.mrf.mxu0
      %v663 = vadd.f32 0.0, %v662
      %v664 = vpop.f32.mrf.mxu0
      %665 = vmatprep.mubr.bf16.mxu0 0
      %666 = vmatmul.mubr.bf16.gmra.mxu0 %v604
      %v667 = vpop.f32.mrf.mxu0
      %v668 = vadd.f32 0.0, %v667
      %v669 = vpop.f32.mrf.mxu0
      %v670 = vpop.f32.mrf.mxu0
      %v671 = vadd.f32 0.0, %v670
      %v672 = vpop.f32.mrf.mxu0
      %673 = vdwg.mxu0
      %v674 = vadd.f32 %v419, %v644
      %v675 = vadd.f32 %v422, %v647
      %v676 = vadd.f32 %v427, %v652
      %v677 = vadd.f32 %v430, %v655
      %v678 = vadd.f32 %v435, %v660
      %v679 = vadd.f32 %v438, %v663
      %v680 = vadd.f32 %v443, %v668
      %v681 = vadd.f32 %v446, %v671
      %s682 = scalar_lea.vmem %s219, 144
      %v683 = vld [vmem:[%s682] sm:$0xf]
      %v684 = vld [vmem:[%s682 + $0x8] sm:$0xf]
      %v685 = vld [vmem:[%s682 + $0x10] sm:$0xf]
      %v686 = vld [vmem:[%s682 + $0x18] sm:$0xf]
      %v687 = vld [vmem:[%s682 + $0x20] sm:$0xf]
      %v688 = vld [vmem:[%s682 + $0x28] sm:$0xf]
      %v689 = vld [vmem:[%s682 + $0x30] sm:$0xf]
      %v690 = vld [vmem:[%s682 + $0x38] sm:$0xf]
      %s691 = scalar_lea.vmem %s1, 6
      %v692 = vld [vmem:[%s691] sm:$0x3]
      %v701 = vunpack.c.l.b16 %v683
      %v702 = vunpack.c.l.b16 %v684
      %v703 = vunpack.c.l.b16 %v685
      %v704 = vunpack.c.l.b16 %v686
      %v705 = vunpack.c.l.b16 %v687
      %v706 = vunpack.c.l.b16 %v688
      %v707 = vunpack.c.l.b16 %v689
      %v708 = vunpack.c.l.b16 %v690
      %v709 = vpack.c.b16 %v702, %v701
      %v710 = vpack.c.b16 %v704, %v703
      %v711 = vpack.c.b16 %v706, %v705
      %v712 = vpack.c.b16 %v708, %v707
      %v714 = vsel %vm267, %v709, 0
      %v717 = vsel %vm267, %v710, 0
      %v720 = vsel %vm267, %v711, 0
      %v723 = vsel %vm267, %v712, 0
      %v726 = vsel %vm280, %v692, 0
      %728 = vmatprep.subr.bf16.mxu0 0
      %729 = vmatpush1.bf16.msra.mxu0 0
      %730 = vmatprep.subr.bf16.mxu0 0
      %731 = vmatpush1.bf16.msra.mxu0 0
      %732 = vmatprep.subr.bf16.mxu0 0
      %733 = vmatpush1.bf16.msra.mxu0 0
      %734 = vmatprep.subr.bf16.mxu0 0
      %735 = vmatpush1.bf16.msra.mxu0 0
      %736 = vmatprep.subr.bf16.mxu0 0
      %737 = vmatpush1.bf16.msra.mxu0 0
      %738 = vmatprep.subr.bf16.mxu0 0
      %739 = vmatpush1.bf16.msra.mxu0 0
      %740 = vmatprep.subr.bf16.mxu0 0
      %741 = vmatpush1.bf16.msra.mxu0 0
      %742 = vmatprep.subr.bf16.mxu0 0
      %743 = vmatpush1.bf16.msra.mxu0 %v726
      %744 = vmatprep.subr.bf16.mxu0 0
      %745 = vmatpush2.bf16.msra.mxu0 0
      %746 = vmatprep.subr.bf16.mxu0 0
      %747 = vmatpush2.bf16.msra.mxu0 0
      %748 = vmatprep.subr.bf16.mxu0 0
      %749 = vmatpush2.bf16.msra.mxu0 0
      %750 = vmatprep.subr.bf16.mxu0 0
      %751 = vmatpush2.bf16.msra.mxu0 0
      %752 = vmatprep.subr.bf16.mxu0 0
      %753 = vmatpush2.bf16.msra.mxu0 0
      %754 = vmatprep.subr.bf16.mxu0 0
      %755 = vmatpush2.bf16.msra.mxu0 0
      %756 = vmatprep.subr.bf16.mxu0 0
      %757 = vmatpush2.bf16.msra.mxu0 0
      %758 = vmatprep.subr.bf16.mxu0 0
      %759 = vmatpush2.bf16.msra.mxu0 0
      %760 = vmatprep.mubr.bf16.mxu0 0
      %761 = vmatmul.mubr.bf16.gmra.mxu0 %v714
      %v762 = vpop.f32.mrf.mxu0
      %v763 = vadd.f32 0.0, %v762
      %v764 = vpop.f32.mrf.mxu0
      %v765 = vpop.f32.mrf.mxu0
      %v766 = vadd.f32 0.0, %v765
      %v767 = vpop.f32.mrf.mxu0
      %768 = vmatprep.mubr.bf16.mxu0 0
      %769 = vmatmul.mubr.bf16.gmra.mxu0 %v717
      %v770 = vpop.f32.mrf.mxu0
      %v771 = vadd.f32 0.0, %v770
      %v772 = vpop.f32.mrf.mxu0
      %v773 = vpop.f32.mrf.mxu0
      %v774 = vadd.f32 0.0, %v773
      %v775 = vpop.f32.mrf.mxu0
      %776 = vmatprep.mubr.bf16.mxu0 0
      %777 = vmatmul.mubr.bf16.gmra.mxu0 %v720
      %v778 = vpop.f32.mrf.mxu0
      %v779 = vadd.f32 0.0, %v778
      %v780 = vpop.f32.mrf.mxu0
      %v781 = vpop.f32.mrf.mxu0
      %v782 = vadd.f32 0.0, %v781
      %v783 = vpop.f32.mrf.mxu0
      %784 = vmatprep.mubr.bf16.mxu0 0
      %785 = vmatmul.mubr.bf16.gmra.mxu0 %v723
      %v786 = vpop.f32.mrf.mxu0
      %v787 = vadd.f32 0.0, %v786
      %v788 = vpop.f32.mrf.mxu0
      %v789 = vpop.f32.mrf.mxu0
      %v790 = vadd.f32 0.0, %v789
      %v791 = vpop.f32.mrf.mxu0
      %792 = vdwg.mxu0
      %v793 = vadd.f32 %v674, %v763
      %v794 = vadd.f32 %v675, %v766
      %v795 = vadd.f32 %v676, %v771
      %v796 = vadd.f32 %v677, %v774
      %v797 = vadd.f32 %v678, %v779
      %v798 = vadd.f32 %v679, %v782
      %v799 = vadd.f32 %v680, %v787
      %v800 = vadd.f32 %v681, %v790
      %s801 = scalar_lea.vmem %s219, 216
      %v802 = vld [vmem:[%s801] sm:$0xf]
      %v803 = vld [vmem:[%s801 + $0x8] sm:$0xf]
      %v804 = vld [vmem:[%s801 + $0x10] sm:$0xf]
      %v805 = vld [vmem:[%s801 + $0x18] sm:$0xf]
      %v806 = vld [vmem:[%s801 + $0x20] sm:$0xf]
      %v807 = vld [vmem:[%s801 + $0x28] sm:$0xf]
      %v808 = vld [vmem:[%s801 + $0x30] sm:$0xf]
      %v809 = vld [vmem:[%s801 + $0x38] sm:$0xf]
      %s810 = scalar_lea.vmem %s1, 8
      %v811 = vld [vmem:[%s810] sm:$0x3]
      %v820 = vunpack.c.l.b16 %v802
      %v821 = vunpack.c.l.b16 %v803
      %v822 = vunpack.c.l.b16 %v804
      %v823 = vunpack.c.l.b16 %v805
      %v824 = vunpack.c.l.b16 %v806
      %v825 = vunpack.c.l.b16 %v807
      %v826 = vunpack.c.l.b16 %v808
      %v827 = vunpack.c.l.b16 %v809
      %v828 = vpack.c.b16 %v821, %v820
      %v829 = vpack.c.b16 %v823, %v822
      %v830 = vpack.c.b16 %v825, %v824
      %v831 = vpack.c.b16 %v827, %v826
      %v833 = vsel %vm267, %v828, 0
      %v836 = vsel %vm267, %v829, 0
      %v839 = vsel %vm267, %v830, 0
      %v842 = vsel %vm267, %v831, 0
      %v845 = vsel %vm280, %v811, 0
      %847 = vmatprep.subr.bf16.mxu0 0
      %848 = vmatpush1.bf16.msra.mxu0 0
      %849 = vmatprep.subr.bf16.mxu0 0
      %850 = vmatpush1.bf16.msra.mxu0 0
      %851 = vmatprep.subr.bf16.mxu0 0
      %852 = vmatpush1.bf16.msra.mxu0 0
      %853 = vmatprep.subr.bf16.mxu0 0
      %854 = vmatpush1.bf16.msra.mxu0 0
      %855 = vmatprep.subr.bf16.mxu0 0
      %856 = vmatpush1.bf16.msra.mxu0 0
      %857 = vmatprep.subr.bf16.mxu0 0
      %858 = vmatpush1.bf16.msra.mxu0 0
      %859 = vmatprep.subr.bf16.mxu0 0
      %860 = vmatpush1.bf16.msra.mxu0 0
      %861 = vmatprep.subr.bf16.mxu0 0
      %862 = vmatpush1.bf16.msra.mxu0 %v845
      %863 = vmatprep.subr.bf16.mxu0 0
      %864 = vmatpush2.bf16.msra.mxu0 0
      %865 = vmatprep.subr.bf16.mxu0 0
      %866 = vmatpush2.bf16.msra.mxu0 0
      %867 = vmatprep.subr.bf16.mxu0 0
      %868 = vmatpush2.bf16.msra.mxu0 0
      %869 = vmatprep.subr.bf16.mxu0 0
      %870 = vmatpush2.bf16.msra.mxu0 0
      %871 = vmatprep.subr.bf16.mxu0 0
      %872 = vmatpush2.bf16.msra.mxu0 0
      %873 = vmatprep.subr.bf16.mxu0 0
      %874 = vmatpush2.bf16.msra.mxu0 0
      %875 = vmatprep.subr.bf16.mxu0 0
      %876 = vmatpush2.bf16.msra.mxu0 0
      %877 = vmatprep.subr.bf16.mxu0 0
      %878 = vmatpush2.bf16.msra.mxu0 0
      %879 = vmatprep.mubr.bf16.mxu0 0
      %880 = vmatmul.mubr.bf16.gmra.mxu0 %v833
      %v881 = vpop.f32.mrf.mxu0
      %v882 = vadd.f32 0.0, %v881
      %v883 = vpop.f32.mrf.mxu0
      %v884 = vpop.f32.mrf.mxu0
      %v885 = vadd.f32 0.0, %v884
      %v886 = vpop.f32.mrf.mxu0
      %887 = vmatprep.mubr.bf16.mxu0 0
      %888 = vmatmul.mubr.bf16.gmra.mxu0 %v836
      %v889 = vpop.f32.mrf.mxu0
      %v890 = vadd.f32 0.0, %v889
      %v891 = vpop.f32.mrf.mxu0
      %v892 = vpop.f32.mrf.mxu0
      %v893 = vadd.f32 0.0, %v892
      %v894 = vpop.f32.mrf.mxu0
      %895 = vmatprep.mubr.bf16.mxu0 0
      %896 = vmatmul.mubr.bf16.gmra.mxu0 %v839
      %v897 = vpop.f32.mrf.mxu0
      %v898 = vadd.f32 0.0, %v897
      %v899 = vpop.f32.mrf.mxu0
      %v900 = vpop.f32.mrf.mxu0
      %v901 = vadd.f32 0.0, %v900
      %v902 = vpop.f32.mrf.mxu0
      %903 = vmatprep.mubr.bf16.mxu0 0
      %904 = vmatmul.mubr.bf16.gmra.mxu0 %v842
      %v905 = vpop.f32.mrf.mxu0
      %v906 = vadd.f32 0.0, %v905
      %v907 = vpop.f32.mrf.mxu0
      %v908 = vpop.f32.mrf.mxu0
      %v909 = vadd.f32 0.0, %v908
      %v910 = vpop.f32.mrf.mxu0
      %911 = vdwg.mxu0
      %v912 = vadd.f32 %v793, %v882
      %v913 = vadd.f32 %v794, %v885
      %v914 = vadd.f32 %v795, %v890
      %v915 = vadd.f32 %v796, %v893
      %v916 = vadd.f32 %v797, %v898
      %v917 = vadd.f32 %v798, %v901
      %v918 = vadd.f32 %v799, %v906
      %v919 = vadd.f32 %v800, %v909
      %v920 = vld [vmem:[%s682] sm:$0xf]
      %v921 = vld [vmem:[%s682 + $0x4] sm:$0x1]
      %v922 = vld [vmem:[%s682 + $0x8] sm:$0xf]
      %v923 = vld [vmem:[%s682 + $0xc] sm:$0x1]
      %v924 = vld [vmem:[%s682 + $0x10] sm:$0xf]
      %v925 = vld [vmem:[%s682 + $0x14] sm:$0x1]
      %v926 = vld [vmem:[%s682 + $0x18] sm:$0xf]
      %v927 = vld [vmem:[%s682 + $0x1c] sm:$0x1]
      %v928 = vld [vmem:[%s682 + $0x20] sm:$0xf]
      %v929 = vld [vmem:[%s682 + $0x24] sm:$0x1]
      %v930 = vld [vmem:[%s682 + $0x28] sm:$0xf]
      %v931 = vld [vmem:[%s682 + $0x2c] sm:$0x1]
      %v932 = vld [vmem:[%s682 + $0x30] sm:$0xf]
      %v933 = vld [vmem:[%s682 + $0x34] sm:$0x1]
      %v934 = vld [vmem:[%s682 + $0x38] sm:$0xf]
      %v935 = vld [vmem:[%s682 + $0x3c] sm:$0x1]
      %v937 = vshrl.u32 %v920, 16
      %v939 = vrot.slane %v937, 4
      %v940 = vshll.u32 %v920, 16
      %v942 = vrot.slane %v940, 5
      %v943 = vor.u32 %v939, %v942
      %v944 = vrot.slane %v943, 4
      %v946 = vshll.u32 %v921, 16
      %v948 = vrot.slane %v946, 5
      %v949 = vsel %vm467, %v944, %v948
      %v951 = vshrl.u32 %v922, 16
      %v953 = vrot.slane %v951, 4
      %v954 = vshll.u32 %v922, 16
      %v956 = vrot.slane %v954, 5
      %v957 = vor.u32 %v953, %v956
      %v958 = vrot.slane %v957, 4
      %v960 = vshll.u32 %v923, 16
      %v962 = vrot.slane %v960, 5
      %v963 = vsel %vm467, %v958, %v962
      %v965 = vshrl.u32 %v924, 16
      %v967 = vrot.slane %v965, 4
      %v968 = vshll.u32 %v924, 16
      %v970 = vrot.slane %v968, 5
      %v971 = vor.u32 %v967, %v970
      %v972 = vrot.slane %v971, 4
      %v974 = vshll.u32 %v925, 16
      %v976 = vrot.slane %v974, 5
      %v977 = vsel %vm467, %v972, %v976
      %v979 = vshrl.u32 %v926, 16
      %v981 = vrot.slane %v979, 4
      %v982 = vshll.u32 %v926, 16
      %v984 = vrot.slane %v982, 5
      %v985 = vor.u32 %v981, %v984
      %v986 = vrot.slane %v985, 4
      %v988 = vshll.u32 %v927, 16
      %v990 = vrot.slane %v988, 5
      %v991 = vsel %vm467, %v986, %v990
      %v993 = vshrl.u32 %v928, 16
      %v995 = vrot.slane %v993, 4
      %v996 = vshll.u32 %v928, 16
      %v998 = vrot.slane %v996, 5
      %v999 = vor.u32 %v995, %v998
      %v1000 = vrot.slane %v999, 4
      %v1002 = vshll.u32 %v929, 16
      %v1004 = vrot.slane %v1002, 5
      %v1005 = vsel %vm467, %v1000, %v1004
      %v1007 = vshrl.u32 %v930, 16
      %v1009 = vrot.slane %v1007, 4
      %v1010 = vshll.u32 %v930, 16
      %v1012 = vrot.slane %v1010, 5
      %v1013 = vor.u32 %v1009, %v1012
      %v1014 = vrot.slane %v1013, 4
      %v1016 = vshll.u32 %v931, 16
      %v1018 = vrot.slane %v1016, 5
      %v1019 = vsel %vm467, %v1014, %v1018
      %v1021 = vshrl.u32 %v932, 16
      %v1023 = vrot.slane %v1021, 4
      %v1024 = vshll.u32 %v932, 16
      %v1026 = vrot.slane %v1024, 5
      %v1027 = vor.u32 %v1023, %v1026
      %v1028 = vrot.slane %v1027, 4
      %v1030 = vshll.u32 %v933, 16
      %v1032 = vrot.slane %v1030, 5
      %v1033 = vsel %vm467, %v1028, %v1032
      %v1035 = vshrl.u32 %v934, 16
      %v1037 = vrot.slane %v1035, 4
      %v1038 = vshll.u32 %v934, 16
      %v1040 = vrot.slane %v1038, 5
      %v1041 = vor.u32 %v1037, %v1040
      %v1042 = vrot.slane %v1041, 4
      %v1044 = vshll.u32 %v935, 16
      %v1046 = vrot.slane %v1044, 5
      %v1047 = vsel %vm467, %v1042, %v1046
      %s1048 = scalar_lea.vmem %s1, 10
      %v1049 = vld [vmem:[%s1048] sm:$0x3]
      %v1050 = vunpack.c.l.b16 %v949
      %v1051 = vunpack.c.l.b16 %v963
      %v1052 = vunpack.c.l.b16 %v977
      %v1053 = vunpack.c.l.b16 %v991
      %v1054 = vunpack.c.l.b16 %v1005
      %v1055 = vunpack.c.l.b16 %v1019
      %v1056 = vunpack.c.l.b16 %v1033
      %v1057 = vunpack.c.l.b16 %v1047
      %v1058 = vpack.c.b16 %v1051, %v1050
      %v1059 = vpack.c.b16 %v1053, %v1052
      %v1060 = vpack.c.b16 %v1055, %v1054
      %v1061 = vpack.c.b16 %v1057, %v1056
      %v1063 = vsel %vm267, %v1058, 0
      %v1066 = vsel %vm267, %v1059, 0
      %v1069 = vsel %vm267, %v1060, 0
      %v1072 = vsel %vm267, %v1061, 0
      %v1075 = vsel %vm280, %v1049, 0
      %1077 = vmatprep.subr.bf16.mxu0 0
      %1078 = vmatpush1.bf16.msra.mxu0 0
      %1079 = vmatprep.subr.bf16.mxu0 0
      %1080 = vmatpush1.bf16.msra.mxu0 0
      %1081 = vmatprep.subr.bf16.mxu0 0
      %1082 = vmatpush1.bf16.msra.mxu0 0
      %1083 = vmatprep.subr.bf16.mxu0 0
      %1084 = vmatpush1.bf16.msra.mxu0 0
      %1085 = vmatprep.subr.bf16.mxu0 0
      %1086 = vmatpush1.bf16.msra.mxu0 0
      %1087 = vmatprep.subr.bf16.mxu0 0
      %1088 = vmatpush1.bf16.msra.mxu0 0
      %1089 = vmatprep.subr.bf16.mxu0 0
      %1090 = vmatpush1.bf16.msra.mxu0 0
      %1091 = vmatprep.subr.bf16.mxu0 0
      %1092 = vmatpush1.bf16.msra.mxu0 %v1075
      %1093 = vmatprep.subr.bf16.mxu0 0
      %1094 = vmatpush2.bf16.msra.mxu0 0
      %1095 = vmatprep.subr.bf16.mxu0 0
      %1096 = vmatpush2.bf16.msra.mxu0 0
      %1097 = vmatprep.subr.bf16.mxu0 0
      %1098 = vmatpush2.bf16.msra.mxu0 0
      %1099 = vmatprep.subr.bf16.mxu0 0
      %1100 = vmatpush2.bf16.msra.mxu0 0
      %1101 = vmatprep.subr.bf16.mxu0 0
      %1102 = vmatpush2.bf16.msra.mxu0 0
      %1103 = vmatprep.subr.bf16.mxu0 0
      %1104 = vmatpush2.bf16.msra.mxu0 0
      %1105 = vmatprep.subr.bf16.mxu0 0
      %1106 = vmatpush2.bf16.msra.mxu0 0
      %1107 = vmatprep.subr.bf16.mxu0 0
      %1108 = vmatpush2.bf16.msra.mxu0 0
      %1109 = vmatprep.mubr.bf16.mxu0 0
      %1110 = vmatmul.mubr.bf16.gmra.mxu0 %v1063
      %v1111 = vpop.f32.mrf.mxu0
      %v1112 = vadd.f32 0.0, %v1111
      %v1113 = vpop.f32.mrf.mxu0
      %v1114 = vpop.f32.mrf.mxu0
      %v1115 = vadd.f32 0.0, %v1114
      %v1116 = vpop.f32.mrf.mxu0
      %1117 = vmatprep.mubr.bf16.mxu0 0
      %1118 = vmatmul.mubr.bf16.gmra.mxu0 %v1066
      %v1119 = vpop.f32.mrf.mxu0
      %v1120 = vadd.f32 0.0, %v1119
      %v1121 = vpop.f32.mrf.mxu0
      %v1122 = vpop.f32.mrf.mxu0
      %v1123 = vadd.f32 0.0, %v1122
      %v1124 = vpop.f32.mrf.mxu0
      %1125 = vmatprep.mubr.bf16.mxu0 0
      %1126 = vmatmul.mubr.bf16.gmra.mxu0 %v1069
      %v1127 = vpop.f32.mrf.mxu0
      %v1128 = vadd.f32 0.0, %v1127
      %v1129 = vpop.f32.mrf.mxu0
      %v1130 = vpop.f32.mrf.mxu0
      %v1131 = vadd.f32 0.0, %v1130
      %v1132 = vpop.f32.mrf.mxu0
      %1133 = vmatprep.mubr.bf16.mxu0 0
      %1134 = vmatmul.mubr.bf16.gmra.mxu0 %v1072
      %v1135 = vpop.f32.mrf.mxu0
      %v1136 = vadd.f32 0.0, %v1135
      %v1137 = vpop.f32.mrf.mxu0
      %v1138 = vpop.f32.mrf.mxu0
      %v1139 = vadd.f32 0.0, %v1138
      %v1140 = vpop.f32.mrf.mxu0
      %1141 = vdwg.mxu0
      %v1142 = vadd.f32 %v912, %v1112
      %v1143 = vadd.f32 %v913, %v1115
      %v1144 = vadd.f32 %v914, %v1120
      %v1145 = vadd.f32 %v915, %v1123
      %v1146 = vadd.f32 %v916, %v1128
      %v1147 = vadd.f32 %v917, %v1131
      %v1148 = vadd.f32 %v918, %v1136
      %v1149 = vadd.f32 %v919, %v1139
      %s1150 = scalar_lea.vmem %s219, 8
      %v1151 = vld [vmem:[%s1150] sm:$0xf]
      %v1152 = vld [vmem:[%s1150 + $0x8] sm:$0xf]
      %v1153 = vld [vmem:[%s1150 + $0x10] sm:$0xf]
      %v1154 = vld [vmem:[%s1150 + $0x18] sm:$0xf]
      %v1155 = vld [vmem:[%s1150 + $0x20] sm:$0xf]
      %v1156 = vld [vmem:[%s1150 + $0x28] sm:$0xf]
      %v1157 = vld [vmem:[%s1150 + $0x30] sm:$0xf]
      %v1158 = vld [vmem:[%s1150 + $0x38] sm:$0xf]
      %s1159 = scalar_lea.vmem %s1, 12
      %v1160 = vld [vmem:[%s1159] sm:$0x3]
      %v1169 = vunpack.c.l.b16 %v1151
      %v1170 = vunpack.c.l.b16 %v1152
      %v1171 = vunpack.c.l.b16 %v1153
      %v1172 = vunpack.c.l.b16 %v1154
      %v1173 = vunpack.c.l.b16 %v1155
      %v1174 = vunpack.c.l.b16 %v1156
      %v1175 = vunpack.c.l.b16 %v1157
      %v1176 = vunpack.c.l.b16 %v1158
      %v1177 = vpack.c.b16 %v1170, %v1169
      %v1178 = vpack.c.b16 %v1172, %v1171
      %v1179 = vpack.c.b16 %v1174, %v1173
      %v1180 = vpack.c.b16 %v1176, %v1175
      %v1182 = vsel %vm267, %v1177, 0
      %v1185 = vsel %vm267, %v1178, 0
      %v1188 = vsel %vm267, %v1179, 0
      %v1191 = vsel %vm267, %v1180, 0
      %v1194 = vsel %vm280, %v1160, 0
      %1196 = vmatprep.subr.bf16.mxu0 0
      %1197 = vmatpush1.bf16.msra.mxu0 0
      %1198 = vmatprep.subr.bf16.mxu0 0
      %1199 = vmatpush1.bf16.msra.mxu0 0
      %1200 = vmatprep.subr.bf16.mxu0 0
      %1201 = vmatpush1.bf16.msra.mxu0 0
      %1202 = vmatprep.subr.bf16.mxu0 0
      %1203 = vmatpush1.bf16.msra.mxu0 0
      %1204 = vmatprep.subr.bf16.mxu0 0
      %1205 = vmatpush1.bf16.msra.mxu0 0
      %1206 = vmatprep.subr.bf16.mxu0 0
      %1207 = vmatpush1.bf16.msra.mxu0 0
      %1208 = vmatprep.subr.bf16.mxu0 0
      %1209 = vmatpush1.bf16.msra.mxu0 0
      %1210 = vmatprep.subr.bf16.mxu0 0
      %1211 = vmatpush1.bf16.msra.mxu0 %v1194
      %1212 = vmatprep.subr.bf16.mxu0 0
      %1213 = vmatpush2.bf16.msra.mxu0 0
      %1214 = vmatprep.subr.bf16.mxu0 0
      %1215 = vmatpush2.bf16.msra.mxu0 0
      %1216 = vmatprep.subr.bf16.mxu0 0
      %1217 = vmatpush2.bf16.msra.mxu0 0
      %1218 = vmatprep.subr.bf16.mxu0 0
      %1219 = vmatpush2.bf16.msra.mxu0 0
      %1220 = vmatprep.subr.bf16.mxu0 0
      %1221 = vmatpush2.bf16.msra.mxu0 0
      %1222 = vmatprep.subr.bf16.mxu0 0
      %1223 = vmatpush2.bf16.msra.mxu0 0
      %1224 = vmatprep.subr.bf16.mxu0 0
      %1225 = vmatpush2.bf16.msra.mxu0 0
      %1226 = vmatprep.subr.bf16.mxu0 0
      %1227 = vmatpush2.bf16.msra.mxu0 0
      %1228 = vmatprep.mubr.bf16.mxu0 0
      %1229 = vmatmul.mubr.bf16.gmra.mxu0 %v1182
      %v1230 = vpop.f32.mrf.mxu0
      %v1231 = vadd.f32 0.0, %v1230
      %v1232 = vpop.f32.mrf.mxu0
      %v1233 = vpop.f32.mrf.mxu0
      %v1234 = vadd.f32 0.0, %v1233
      %v1235 = vpop.f32.mrf.mxu0
      %1236 = vmatprep.mubr.bf16.mxu0 0
      %1237 = vmatmul.mubr.bf16.gmra.mxu0 %v1185
      %v1238 = vpop.f32.mrf.mxu0
      %v1239 = vadd.f32 0.0, %v1238
      %v1240 = vpop.f32.mrf.mxu0
      %v1241 = vpop.f32.mrf.mxu0
      %v1242 = vadd.f32 0.0, %v1241
      %v1243 = vpop.f32.mrf.mxu0
      %1244 = vmatprep.mubr.bf16.mxu0 0
      %1245 = vmatmul.mubr.bf16.gmra.mxu0 %v1188
      %v1246 = vpop.f32.mrf.mxu0
      %v1247 = vadd.f32 0.0, %v1246
      %v1248 = vpop.f32.mrf.mxu0
      %v1249 = vpop.f32.mrf.mxu0
      %v1250 = vadd.f32 0.0, %v1249
      %v1251 = vpop.f32.mrf.mxu0
      %1252 = vmatprep.mubr.bf16.mxu0 0
      %1253 = vmatmul.mubr.bf16.gmra.mxu0 %v1191
      %v1254 = vpop.f32.mrf.mxu0
      %v1255 = vadd.f32 0.0, %v1254
      %v1256 = vpop.f32.mrf.mxu0
      %v1257 = vpop.f32.mrf.mxu0
      %v1258 = vadd.f32 0.0, %v1257
      %v1259 = vpop.f32.mrf.mxu0
      %1260 = vdwg.mxu0
      %v1261 = vadd.f32 %v1142, %v1231
      %v1262 = vadd.f32 %v1143, %v1234
      %v1263 = vadd.f32 %v1144, %v1239
      %v1264 = vadd.f32 %v1145, %v1242
      %v1265 = vadd.f32 %v1146, %v1247
      %v1266 = vadd.f32 %v1147, %v1250
      %v1267 = vadd.f32 %v1148, %v1255
      %v1268 = vadd.f32 %v1149, %v1258
      %s1269 = scalar_lea.vmem %s219, 80
      %v1270 = vld [vmem:[%s1269] sm:$0xf]
      %v1271 = vld [vmem:[%s1269 + $0x8] sm:$0xf]
      %v1272 = vld [vmem:[%s1269 + $0x10] sm:$0xf]
      %v1273 = vld [vmem:[%s1269 + $0x18] sm:$0xf]
      %v1274 = vld [vmem:[%s1269 + $0x20] sm:$0xf]
      %v1275 = vld [vmem:[%s1269 + $0x28] sm:$0xf]
      %v1276 = vld [vmem:[%s1269 + $0x30] sm:$0xf]
      %v1277 = vld [vmem:[%s1269 + $0x38] sm:$0xf]
      %s1278 = scalar_lea.vmem %s1, 14
      %v1279 = vld [vmem:[%s1278] sm:$0x3]
      %v1288 = vunpack.c.l.b16 %v1270
      %v1289 = vunpack.c.l.b16 %v1271
      %v1290 = vunpack.c.l.b16 %v1272
      %v1291 = vunpack.c.l.b16 %v1273
      %v1292 = vunpack.c.l.b16 %v1274
      %v1293 = vunpack.c.l.b16 %v1275
      %v1294 = vunpack.c.l.b16 %v1276
      %v1295 = vunpack.c.l.b16 %v1277
      %v1296 = vpack.c.b16 %v1289, %v1288
      %v1297 = vpack.c.b16 %v1291, %v1290
      %v1298 = vpack.c.b16 %v1293, %v1292
      %v1299 = vpack.c.b16 %v1295, %v1294
      %v1301 = vsel %vm267, %v1296, 0
      %v1304 = vsel %vm267, %v1297, 0
      %v1307 = vsel %vm267, %v1298, 0
      %v1310 = vsel %vm267, %v1299, 0
      %v1313 = vsel %vm280, %v1279, 0
      %1315 = vmatprep.subr.bf16.mxu0 0
      %1316 = vmatpush1.bf16.msra.mxu0 0
      %1317 = vmatprep.subr.bf16.mxu0 0
      %1318 = vmatpush1.bf16.msra.mxu0 0
      %1319 = vmatprep.subr.bf16.mxu0 0
      %1320 = vmatpush1.bf16.msra.mxu0 0
      %1321 = vmatprep.subr.bf16.mxu0 0
      %1322 = vmatpush1.bf16.msra.mxu0 0
      %1323 = vmatprep.subr.bf16.mxu0 0
      %1324 = vmatpush1.bf16.msra.mxu0 0
      %1325 = vmatprep.subr.bf16.mxu0 0
      %1326 = vmatpush1.bf16.msra.mxu0 0
      %1327 = vmatprep.subr.bf16.mxu0 0
      %1328 = vmatpush1.bf16.msra.mxu0 0
      %1329 = vmatprep.subr.bf16.mxu0 0
      %1330 = vmatpush1.bf16.msra.mxu0 %v1313
      %1331 = vmatprep.subr.bf16.mxu0 0
      %1332 = vmatpush2.bf16.msra.mxu0 0
      %1333 = vmatprep.subr.bf16.mxu0 0
      %1334 = vmatpush2.bf16.msra.mxu0 0
      %1335 = vmatprep.subr.bf16.mxu0 0
      %1336 = vmatpush2.bf16.msra.mxu0 0
      %1337 = vmatprep.subr.bf16.mxu0 0
      %1338 = vmatpush2.bf16.msra.mxu0 0
      %1339 = vmatprep.subr.bf16.mxu0 0
      %1340 = vmatpush2.bf16.msra.mxu0 0
      %1341 = vmatprep.subr.bf16.mxu0 0
      %1342 = vmatpush2.bf16.msra.mxu0 0
      %1343 = vmatprep.subr.bf16.mxu0 0
      %1344 = vmatpush2.bf16.msra.mxu0 0
      %1345 = vmatprep.subr.bf16.mxu0 0
      %1346 = vmatpush2.bf16.msra.mxu0 0
      %1347 = vmatprep.mubr.bf16.mxu0 0
      %1348 = vmatmul.mubr.bf16.gmra.mxu0 %v1301
      %v1349 = vpop.f32.mrf.mxu0
      %v1350 = vadd.f32 0.0, %v1349
      %v1351 = vpop.f32.mrf.mxu0
      %v1352 = vpop.f32.mrf.mxu0
      %v1353 = vadd.f32 0.0, %v1352
      %v1354 = vpop.f32.mrf.mxu0
      %1355 = vmatprep.mubr.bf16.mxu0 0
      %1356 = vmatmul.mubr.bf16.gmra.mxu0 %v1304
      %v1357 = vpop.f32.mrf.mxu0
      %v1358 = vadd.f32 0.0, %v1357
      %v1359 = vpop.f32.mrf.mxu0
      %v1360 = vpop.f32.mrf.mxu0
      %v1361 = vadd.f32 0.0, %v1360
      %v1362 = vpop.f32.mrf.mxu0
      %1363 = vmatprep.mubr.bf16.mxu0 0
      %1364 = vmatmul.mubr.bf16.gmra.mxu0 %v1307
      %v1365 = vpop.f32.mrf.mxu0
      %v1366 = vadd.f32 0.0, %v1365
      %v1367 = vpop.f32.mrf.mxu0
      %v1368 = vpop.f32.mrf.mxu0
      %v1369 = vadd.f32 0.0, %v1368
      %v1370 = vpop.f32.mrf.mxu0
      %1371 = vmatprep.mubr.bf16.mxu0 0
      %1372 = vmatmul.mubr.bf16.gmra.mxu0 %v1310
      %v1373 = vpop.f32.mrf.mxu0
      %v1374 = vadd.f32 0.0, %v1373
      %v1375 = vpop.f32.mrf.mxu0
      %v1376 = vpop.f32.mrf.mxu0
      %v1377 = vadd.f32 0.0, %v1376
      %v1378 = vpop.f32.mrf.mxu0
      %1379 = vdwg.mxu0
      %v1380 = vadd.f32 %v1261, %v1350
      %v1381 = vadd.f32 %v1262, %v1353
      %v1382 = vadd.f32 %v1263, %v1358
      %v1383 = vadd.f32 %v1264, %v1361
      %v1384 = vadd.f32 %v1265, %v1366
      %v1385 = vadd.f32 %v1266, %v1369
      %v1386 = vadd.f32 %v1267, %v1374
      %v1387 = vadd.f32 %v1268, %v1377
      %v1388 = vld [vmem:[%s1150] sm:$0xf]
      %v1389 = vld [vmem:[%s1150 + $0x4] sm:$0x1]
      %v1390 = vld [vmem:[%s1150 + $0x8] sm:$0xf]
      %v1391 = vld [vmem:[%s1150 + $0xc] sm:$0x1]
      %v1392 = vld [vmem:[%s1150 + $0x10] sm:$0xf]
      %v1393 = vld [vmem:[%s1150 + $0x14] sm:$0x1]
      %v1394 = vld [vmem:[%s1150 + $0x18] sm:$0xf]
      %v1395 = vld [vmem:[%s1150 + $0x1c] sm:$0x1]
      %v1396 = vld [vmem:[%s1150 + $0x20] sm:$0xf]
      %v1397 = vld [vmem:[%s1150 + $0x24] sm:$0x1]
      %v1398 = vld [vmem:[%s1150 + $0x28] sm:$0xf]
      %v1399 = vld [vmem:[%s1150 + $0x2c] sm:$0x1]
      %v1400 = vld [vmem:[%s1150 + $0x30] sm:$0xf]
      %v1401 = vld [vmem:[%s1150 + $0x34] sm:$0x1]
      %v1402 = vld [vmem:[%s1150 + $0x38] sm:$0xf]
      %v1403 = vld [vmem:[%s1150 + $0x3c] sm:$0x1]
      %v1405 = vshrl.u32 %v1388, 16
      %v1407 = vrot.slane %v1405, 4
      %v1408 = vshll.u32 %v1388, 16
      %v1410 = vrot.slane %v1408, 5
      %v1411 = vor.u32 %v1407, %v1410
      %v1412 = vrot.slane %v1411, 4
      %v1414 = vshll.u32 %v1389, 16
      %v1416 = vrot.slane %v1414, 5
      %v1417 = vsel %vm467, %v1412, %v1416
      %v1419 = vshrl.u32 %v1390, 16
      %v1421 = vrot.slane %v1419, 4
      %v1422 = vshll.u32 %v1390, 16
      %v1424 = vrot.slane %v1422, 5
      %v1425 = vor.u32 %v1421, %v1424
      %v1426 = vrot.slane %v1425, 4
      %v1428 = vshll.u32 %v1391, 16
      %v1430 = vrot.slane %v1428, 5
      %v1431 = vsel %vm467, %v1426, %v1430
      %v1433 = vshrl.u32 %v1392, 16
      %v1435 = vrot.slane %v1433, 4
      %v1436 = vshll.u32 %v1392, 16
      %v1438 = vrot.slane %v1436, 5
      %v1439 = vor.u32 %v1435, %v1438
      %v1440 = vrot.slane %v1439, 4
      %v1442 = vshll.u32 %v1393, 16
      %v1444 = vrot.slane %v1442, 5
      %v1445 = vsel %vm467, %v1440, %v1444
      %v1447 = vshrl.u32 %v1394, 16
      %v1449 = vrot.slane %v1447, 4
      %v1450 = vshll.u32 %v1394, 16
      %v1452 = vrot.slane %v1450, 5
      %v1453 = vor.u32 %v1449, %v1452
      %v1454 = vrot.slane %v1453, 4
      %v1456 = vshll.u32 %v1395, 16
      %v1458 = vrot.slane %v1456, 5
      %v1459 = vsel %vm467, %v1454, %v1458
      %v1461 = vshrl.u32 %v1396, 16
      %v1463 = vrot.slane %v1461, 4
      %v1464 = vshll.u32 %v1396, 16
      %v1466 = vrot.slane %v1464, 5
      %v1467 = vor.u32 %v1463, %v1466
      %v1468 = vrot.slane %v1467, 4
      %v1470 = vshll.u32 %v1397, 16
      %v1472 = vrot.slane %v1470, 5
      %v1473 = vsel %vm467, %v1468, %v1472
      %v1475 = vshrl.u32 %v1398, 16
      %v1477 = vrot.slane %v1475, 4
      %v1478 = vshll.u32 %v1398, 16
      %v1480 = vrot.slane %v1478, 5
      %v1481 = vor.u32 %v1477, %v1480
      %v1482 = vrot.slane %v1481, 4
      %v1484 = vshll.u32 %v1399, 16
      %v1486 = vrot.slane %v1484, 5
      %v1487 = vsel %vm467, %v1482, %v1486
      %v1489 = vshrl.u32 %v1400, 16
      %v1491 = vrot.slane %v1489, 4
      %v1492 = vshll.u32 %v1400, 16
      %v1494 = vrot.slane %v1492, 5
      %v1495 = vor.u32 %v1491, %v1494
      %v1496 = vrot.slane %v1495, 4
      %v1498 = vshll.u32 %v1401, 16
      %v1500 = vrot.slane %v1498, 5
      %v1501 = vsel %vm467, %v1496, %v1500
      %v1503 = vshrl.u32 %v1402, 16
      %v1505 = vrot.slane %v1503, 4
      %v1506 = vshll.u32 %v1402, 16
      %v1508 = vrot.slane %v1506, 5
      %v1509 = vor.u32 %v1505, %v1508
      %v1510 = vrot.slane %v1509, 4
      %v1512 = vshll.u32 %v1403, 16
      %v1514 = vrot.slane %v1512, 5
      %v1515 = vsel %vm467, %v1510, %v1514
      %s1516 = scalar_lea.vmem %s1, 16
      %v1517 = vld [vmem:[%s1516] sm:$0x3]
      %v1518 = vunpack.c.l.b16 %v1417
      %v1519 = vunpack.c.l.b16 %v1431
      %v1520 = vunpack.c.l.b16 %v1445
      %v1521 = vunpack.c.l.b16 %v1459
      %v1522 = vunpack.c.l.b16 %v1473
      %v1523 = vunpack.c.l.b16 %v1487
      %v1524 = vunpack.c.l.b16 %v1501
      %v1525 = vunpack.c.l.b16 %v1515
      %v1526 = vpack.c.b16 %v1519, %v1518
      %v1527 = vpack.c.b16 %v1521, %v1520
      %v1528 = vpack.c.b16 %v1523, %v1522
      %v1529 = vpack.c.b16 %v1525, %v1524
      %v1531 = vsel %vm267, %v1526, 0
      %v1534 = vsel %vm267, %v1527, 0
      %v1537 = vsel %vm267, %v1528, 0
      %v1540 = vsel %vm267, %v1529, 0
      %v1543 = vsel %vm280, %v1517, 0
      %1545 = vmatprep.subr.bf16.mxu0 0
      %1546 = vmatpush1.bf16.msra.mxu0 0
      %1547 = vmatprep.subr.bf16.mxu0 0
      %1548 = vmatpush1.bf16.msra.mxu0 0
      %1549 = vmatprep.subr.bf16.mxu0 0
      %1550 = vmatpush1.bf16.msra.mxu0 0
      %1551 = vmatprep.subr.bf16.mxu0 0
      %1552 = vmatpush1.bf16.msra.mxu0 0
      %1553 = vmatprep.subr.bf16.mxu0 0
      %1554 = vmatpush1.bf16.msra.mxu0 0
      %1555 = vmatprep.subr.bf16.mxu0 0
      %1556 = vmatpush1.bf16.msra.mxu0 0
      %1557 = vmatprep.subr.bf16.mxu0 0
      %1558 = vmatpush1.bf16.msra.mxu0 0
      %1559 = vmatprep.subr.bf16.mxu0 0
      %1560 = vmatpush1.bf16.msra.mxu0 %v1543
      %1561 = vmatprep.subr.bf16.mxu0 0
      %1562 = vmatpush2.bf16.msra.mxu0 0
      %1563 = vmatprep.subr.bf16.mxu0 0
      %1564 = vmatpush2.bf16.msra.mxu0 0
      %1565 = vmatprep.subr.bf16.mxu0 0
      %1566 = vmatpush2.bf16.msra.mxu0 0
      %1567 = vmatprep.subr.bf16.mxu0 0
      %1568 = vmatpush2.bf16.msra.mxu0 0
      %1569 = vmatprep.subr.bf16.mxu0 0
      %1570 = vmatpush2.bf16.msra.mxu0 0
      %1571 = vmatprep.subr.bf16.mxu0 0
      %1572 = vmatpush2.bf16.msra.mxu0 0
      %1573 = vmatprep.subr.bf16.mxu0 0
      %1574 = vmatpush2.bf16.msra.mxu0 0
      %1575 = vmatprep.subr.bf16.mxu0 0
      %1576 = vmatpush2.bf16.msra.mxu0 0
      %1577 = vmatprep.mubr.bf16.mxu0 0
      %1578 = vmatmul.mubr.bf16.gmra.mxu0 %v1531
      %v1579 = vpop.f32.mrf.mxu0
      %v1580 = vadd.f32 0.0, %v1579
      %v1581 = vpop.f32.mrf.mxu0
      %v1582 = vpop.f32.mrf.mxu0
      %v1583 = vadd.f32 0.0, %v1582
      %v1584 = vpop.f32.mrf.mxu0
      %1585 = vmatprep.mubr.bf16.mxu0 0
      %1586 = vmatmul.mubr.bf16.gmra.mxu0 %v1534
      %v1587 = vpop.f32.mrf.mxu0
      %v1588 = vadd.f32 0.0, %v1587
      %v1589 = vpop.f32.mrf.mxu0
      %v1590 = vpop.f32.mrf.mxu0
      %v1591 = vadd.f32 0.0, %v1590
      %v1592 = vpop.f32.mrf.mxu0
      %1593 = vmatprep.mubr.bf16.mxu0 0
      %1594 = vmatmul.mubr.bf16.gmra.mxu0 %v1537
      %v1595 = vpop.f32.mrf.mxu0
      %v1596 = vadd.f32 0.0, %v1595
      %v1597 = vpop.f32.mrf.mxu0
      %v1598 = vpop.f32.mrf.mxu0
      %v1599 = vadd.f32 0.0, %v1598
      %v1600 = vpop.f32.mrf.mxu0
      %1601 = vmatprep.mubr.bf16.mxu0 0
      %1602 = vmatmul.mubr.bf16.gmra.mxu0 %v1540
      %v1603 = vpop.f32.mrf.mxu0
      %v1604 = vadd.f32 0.0, %v1603
      %v1605 = vpop.f32.mrf.mxu0
      %v1606 = vpop.f32.mrf.mxu0
      %v1607 = vadd.f32 0.0, %v1606
      %v1608 = vpop.f32.mrf.mxu0
      %1609 = vdwg.mxu0
      %v1610 = vadd.f32 %v1380, %v1580
      %v1611 = vadd.f32 %v1381, %v1583
      %v1612 = vadd.f32 %v1382, %v1588
      %v1613 = vadd.f32 %v1383, %v1591
      %v1614 = vadd.f32 %v1384, %v1596
      %v1615 = vadd.f32 %v1385, %v1599
      %v1616 = vadd.f32 %v1386, %v1604
      %v1617 = vadd.f32 %v1387, %v1607
      %v1618 = vld [vmem:[%s2] sm:$0x1]
      %v1620 = vlaneseq
      %v1621 = vshrl.u32 %v1620, 7
      %v1622 = vsub.s32 0, %v1621
      %v1623 = vrot.slane %v1618, %v1622
      %v1625 = vadd.f32 %v1610, %v1623
      %v1626 = vadd.f32 %v1611, %v1623
      %v1627 = vadd.f32 %v1612, %v1623
      %v1628 = vadd.f32 %v1613, %v1623
      %v1629 = vadd.f32 %v1614, %v1623
      %v1630 = vadd.f32 %v1615, %v1623
      %v1631 = vadd.f32 %v1616, %v1623
      %v1632 = vadd.f32 %v1617, %v1623
      %vm1633 = vcmp.ge.f32.partialorder %v1625, 0.0
      %vm1634 = vcmp.ge.f32.partialorder %v1626, 0.0
      %vm1635 = vcmp.ge.f32.partialorder %v1627, 0.0
      %vm1636 = vcmp.ge.f32.partialorder %v1628, 0.0
      %vm1637 = vcmp.ge.f32.partialorder %v1629, 0.0
      %vm1638 = vcmp.ge.f32.partialorder %v1630, 0.0
      %vm1639 = vcmp.ge.f32.partialorder %v1631, 0.0
      %vm1640 = vcmp.ge.f32.partialorder %v1632, 0.0
      %v1641 = vmul.f32 %v1625, 0.2
      %v1642 = vmul.f32 %v1626, 0.2
      %v1643 = vmul.f32 %v1627, 0.2
      %v1644 = vmul.f32 %v1628, 0.2
      %v1645 = vmul.f32 %v1629, 0.2
      %v1646 = vmul.f32 %v1630, 0.2
      %v1647 = vmul.f32 %v1631, 0.2
      %v1648 = vmul.f32 %v1632, 0.2
      %v1649 = vsel %vm1633, %v1625, %v1641
      %v1650 = vsel %vm1634, %v1626, %v1642
      %v1651 = vsel %vm1635, %v1627, %v1643
      %v1652 = vsel %vm1636, %v1628, %v1644
      %v1653 = vsel %vm1637, %v1629, %v1645
      %v1654 = vsel %vm1638, %v1630, %v1646
      %v1655 = vsel %vm1639, %v1631, %v1647
      %v1656 = vsel %vm1640, %v1632, %v1648
      %v1657 = vld [vmem:[%s3] sm:$0x1]
      %v1659 = vlaneseq
      %v1660 = vshrl.u32 %v1659, 7
      %v1661 = vsub.s32 0, %v1660
      %v1662 = vrot.slane %v1657, %v1661
      %v1664 = vmul.f32 %v1649, %v1662
      %v1665 = vmul.f32 %v1650, %v1662
      %v1666 = vmul.f32 %v1651, %v1662
      %v1667 = vmul.f32 %v1652, %v1662
      %v1668 = vmul.f32 %v1653, %v1662
      %v1669 = vmul.f32 %v1654, %v1662
      %v1670 = vmul.f32 %v1655, %v1662
      %v1671 = vmul.f32 %v1656, %v1662
      %v1672 = vld [vmem:[%s4] sm:$0x1]
      %v1674 = vlaneseq
      %v1675 = vshrl.u32 %v1674, 7
      %v1676 = vsub.s32 0, %v1675
      %v1677 = vrot.slane %v1672, %v1676
      %v1679 = vadd.f32 %v1664, %v1677
      %v1680 = vadd.f32 %v1665, %v1677
      %v1681 = vadd.f32 %v1666, %v1677
      %v1682 = vadd.f32 %v1667, %v1677
      %v1683 = vadd.f32 %v1668, %v1677
      %v1684 = vadd.f32 %v1669, %v1677
      %v1685 = vadd.f32 %v1670, %v1677
      %v1686 = vadd.f32 %v1671, %v1677
      %vm1687 = vcmask 64512
      %1688 = vst.msk [vmem:[%s224] sm:$0xff] %vm1687, %v1679
      %1689 = vst.msk [vmem:[%s224 + $0x8] sm:$0xff] %vm1687, %v1680
      %1690 = vst.msk [vmem:[%s224 + $0x10] sm:$0xff] %vm1687, %v1681
      %1691 = vst.msk [vmem:[%s224 + $0x18] sm:$0xff] %vm1687, %v1682
      %1692 = vst.msk [vmem:[%s224 + $0x20] sm:$0xff] %vm1687, %v1683
      %1693 = vst.msk [vmem:[%s224 + $0x28] sm:$0xff] %vm1687, %v1684
      %1694 = vst.msk [vmem:[%s224 + $0x30] sm:$0xff] %vm1687, %v1685
      %1695 = vst.msk [vmem:[%s224 + $0x38] sm:$0xff] %vm1687, %v1686
      %s1696 = smul.u32 8, %s16
      %p1697 = scmp.lt.s32.totalorder %s1696, 15
      %s1698 = scalar_select %p1697, %s1696, 15
      %s1699 = smul.addr %s1698, 8
      %s1700 = scalar_lea.vmem %s5, %s1699
      // Predicated region
      $region41: #{downsample_forward.1} parent=39 // pred_check
        %p1701 = pneg %p144
      $region42: #{downsample_forward.1} parent=39 // pred_check_branch
        %1703 = sbr.rel (%p1701) target = $region44
      $region43: #{downsample_forward.1} parent=39 // pred_region
        %s1704 = smul.u32 8, %s16
      $region44: #{downsample_forward.1} parent=39 // pred_fallthru
        _
    $region40: #{downsample_forward.1} parent=5 // pred_fallthru
      _
    %p1705 = scmp.le.s32.totalorder 2, %s11
    // Predicated region
    $region45: #{downsample_forward.1} parent=5 // pred_check
      %p1706 = pneg %p1705
    $region46: #{downsample_forward.1} parent=5 // pred_check_branch
      %1708 = sbr.rel (%p1706) target = $region48
    $region47: #{downsample_forward.1} parent=5 // pred_region
      %s1709 = ssub.s32 %s11, 2
      // Predicated region
      $region49: #{downsample_forward.1} parent=47 // pred_check
        %p1710 = pneg %p150
      $region50: #{downsample_forward.1} parent=47 // pred_check_branch
        %1712 = sbr.rel (%p1710) target = $region52
      $region51: #{downsample_forward.1} parent=47 // pred_region
        %s1713 = smul.u32 8, %s17
        %p1714 = scmp.lt.s32.totalorder %s1713, 15
        %s1715 = scalar_select %p1714, %s1713, 15
        %s1716 = smul.addr %s1715, 8
        %s1717 = scalar_lea.vmem %s5, %s1716
      $region52: #{downsample_forward.1} parent=47 // pred_fallthru
        _
    $region48: #{downsample_forward.1} parent=5 // pred_fallthru
      _
  $region6: #{downsample_forward.1} parent=0 // loop_footer
    %s15 = sadd.s32 1, %s11
  $region7: #{downsample_forward.1} parent=0 // loop_footer_branch
    %10 = sbr.rel target = $region3
  $region8: #{downsample_forward.1} parent=0 // loop_exit
    _

</llo_original>
